<compile_context>
chip_gen: v6e
topology: v6e:2x2x1
jax: 0.10.0
libtpu: 0.0.40
codegen_flags: <defaults>
</compile_context>

<pallas_src>
import functools

import numpy as np
import jax
import jax.numpy as jnp
from jax import lax
from jax.experimental import pallas as pl
from jax.experimental.pallas import tpu as pltpu


def _stblock_kernel(x_ref, g_ref, wt2_ref, bias_ref, o_ref, spat_scr, col_scr,
                    *, n_blk, v, c_out, t_pad, t_k):
    """One grid step = n_blk batch samples.

    x_ref    : (1, C_in*V, n_blk*T_pad) bf16  rows=(cin,v), lanes=(sample,time)
    g_ref    : (V*C_out, C_in*V)        bf16  fused spatial operator, rows=(w,c)
    wt2_ref  : (C_out, t_k*C_out)       bf16  temporal taps, cols=(dt,d)
    bias_ref : (C_out, V*T_pad)         f32   folded spatial+temporal bias
    o_ref    : (n_blk, C_out, V*T_pad)  bf16  lanes=(node,time); t>=T_out junk
    spat_scr : (V*C_out, n_blk*T_pad)   bf16  spatial-stage staging
    col_scr  : (t_k*C_out, V*T_pad)     bf16  temporal im2col staging
    """
    lanes = v * t_pad

    # ---- spatial stage: channel mix + K adjacency contractions fused into ONE
    #      MXU matmul over all n_blk samples (contraction depth C_in*V).
    spat = jnp.dot(g_ref[...], x_ref[0], preferred_element_type=jnp.float32)
    spat_scr[...] = spat.astype(spat_scr.dtype)

    wt2 = wt2_ref[...]
    bias = bias_ref[...]

    for nb in range(n_blk):          # n_blk is small & static (VMEM-budgeted)
        # -- relayout (w,c)-major rows into a (C_out, V*T_pad) lane-merged slab;
        #    this fills the dt = 0 row block of the im2col scratch.
        for w in range(v):
            col_scr[0:c_out, w * t_pad:(w + 1) * t_pad] = (
                spat_scr[w * c_out:(w + 1) * c_out,
                         nb * t_pad:(nb + 1) * t_pad])
        slab = col_scr[0:c_out, :]   # (C_out, V*T_pad) bf16

        # -- im2col row blocks dt = 1..t_k-1: slab shifted left by dt lanes.
        #    t' + dt <= T_out-1 + t_k-1 = T_pad-1 stays inside each node's
        #    zero-padded time segment, so no cross-node/sample bleed; the dt
        #    tail lanes only feed t' >= T_out outputs, which are discarded.
        for dt in range(1, t_k):
            col_scr[dt * c_out:(dt + 1) * c_out, 0:lanes - dt] = slab[:, dt:]
            col_scr[dt * c_out:(dt + 1) * c_out, lanes - dt:lanes] = (
                jnp.zeros((c_out, dt), dtype=slab.dtype))

        # -- temporal conv: ONE matmul, contraction depth t_k*C_out.
        out = jnp.dot(wt2, col_scr[...], preferred_element_type=jnp.float32)
        o_ref[nb] = (out + bias).astype(o_ref.dtype)


def precompute_stblock_params(adj, ws, bs, wt, bt, *, out_features, len_A,
                              seq_len, t_kernel=9, t_stride=1,
                              compute_dtype=jnp.bfloat16,
                              out_dtype=jnp.bfloat16):
    """Build all derived kernel parameters ONCE (outside the per-forward path).

    adj: (K, V, V), ws: (C_out*K, C_in), bs: (C_out*K,),
    wt: (C_out, C_out, t_kernel), bt: (C_out,).
    """
    C_out, K = out_features, len_A
    _, V, _ = adj.shape
    C_in = ws.shape[1]
    T = seq_len
    pad = (t_kernel - 1) // 2
    T_out = (T + 2 * pad - t_kernel) // t_stride + 1
    T_pad = T + 2 * pad

    # Fused spatial operator: G[(w,c),(cin,v)] = sum_k ws[c*K+k,cin]*adj[k,v,w]
    ws_k = ws.reshape(C_out, K, C_in)                              # [c,k,cin]
    g = jnp.einsum('cki,kvw->wciv', ws_k, adj).reshape(V * C_out, C_in * V)

    # Temporal taps as one matrix: WT2[c', dt*C_out + d] = wt[c', d, dt]
    wt2 = jnp.transpose(wt, (0, 2, 1)).reshape(C_out, t_kernel * C_out)

    # Fold the spatial bias through adjacency + temporal conv (+ temporal bias):
    #   (y + b) @ A = y @ A + b * colsum(A); edge taps see fewer valid steps.
    bs_k = bs.reshape(C_out, K)                                    # [c,k]
    colsum = adj.sum(axis=1)                                       # [k,w]
    bias_spat = jnp.einsum('ck,kw->cw', bs_k, colsum)              # [c,w]
    t_in = ((jnp.arange(T_out) * t_stride)[:, None]
            + jnp.arange(t_kernel)[None, :] - pad)                 # [t_out, dt]
    valid = ((t_in >= 0) & (t_in < T)).astype(jnp.float32)
    wsum = jnp.einsum('ocd,td->otc', wt, valid)                    # [o,t_out,c]
    bias_cwt = bt[:, None, None] + jnp.einsum('otc,cw->owt', wsum, bias_spat)
    bias_full = jnp.pad(bias_cwt, ((0, 0), (0, 0), (0, T_pad - T_out)))
    bias_full = bias_full.reshape(C_out, V * T_pad)                # lanes (w,t')

    return dict(g=g.astype(compute_dtype),
                wt2=wt2.astype(compute_dtype),
                bias_full=bias_full.astype(jnp.float32),
                C_in=C_in, C_out=C_out, K=K, V=V, T=T, T_out=T_out, T_pad=T_pad,
                t_kernel=t_kernel, t_stride=t_stride, pad=pad,
                compute_dtype=compute_dtype, out_dtype=out_dtype)


def _vmem_limit_bytes():
    try:
        cap = int(pltpu.get_tpu_info().vmem_capacity_bytes)
    except Exception:
        cap = 64 * 1024 * 1024            # conservative (v7x per-core VMEM)
    return (cap * 3) // 4                 # leave headroom for the compiler


def _vmem_footprint(nb, c_in, c_out, v, t_pad, t_k, single_buffer_consts,
                    out_bytes=2):
    bf, f4 = 2, 4
    cb = 1 if single_buffer_consts else 2
    lanes = v * t_pad
    total = 0
    total += c_in * v * nb * t_pad * bf * 2        # x block (double-buffered)
    total += nb * c_out * lanes * out_bytes * 2    # output block (double-buffered)
    total += v * c_out * c_in * v * bf * cb        # fused spatial operator
    total += c_out * t_k * c_out * bf * cb         # temporal taps
    total += c_out * lanes * f4 * cb               # folded bias
    total += v * c_out * nb * t_pad * bf           # spatial staging scratch
    total += t_k * c_out * lanes * bf              # im2col scratch
    total += v * c_out * nb * t_pad * f4           # transient spatial f32 value
    total += 2 * c_out * lanes * f4                # transient temporal f32 values
    return total


def _pick_block_n(n, budget, footprint):
    cands = [d for d in (8, 4, 2, 1) if n % d == 0]
    # prefer >= 2 grid steps so megacore / v7x's 2 TensorCores both get work
    pref = [d for d in cands if n // d >= 2] or cands
    for d in pref:
        if footprint(d) <= budget:
            return d
    return pref[-1]


def stblock_forward(x, params, *, block_n=None, module_layout=True):
    """x: (N, C_in, T, V) f32.  Returns (N, C_out, T_out, V) (module layout)."""
    p = params
    N, C_in, T, V = x.shape
    assert C_in == p['C_in'] and V == p['V'] and T == p['T']
    if p['t_stride'] != 1:
        # TODO(synk): strided temporal conv needs strided lane gathers in-kernel.
        raise NotImplementedError("Pallas STBlock kernel supports t_stride == 1")
    C_out, T_out, T_pad = p['C_out'], p['T_out'], p['T_pad']
    t_k, pad = p['t_kernel'], p['pad']
    lanes = V * T_pad
    # dt-shift must stay inside each zero-padded per-(sample,node) time segment
    assert t_k - 1 <= T_pad - T_out

    vmem_limit = _vmem_limit_bytes()
    out_bytes = jnp.dtype(p['out_dtype']).itemsize
    if block_n is None:
        block_n = _pick_block_n(
            N, (vmem_limit * 4) // 5,
            lambda nb: _vmem_footprint(nb, C_in, C_out, V, T_pad, t_k, True,
                                       out_bytes=out_bytes))
    assert N % block_n == 0
    n_grid = N // block_n

    # Wrapper-side layout plumbing: (N,C_in,T,V) -> (n_grid, C_in*V, block_n*T_pad)
    # rows=(cin,v), lanes=(sample,time), zero-padded in time so the purely linear
    # kernel path reproduces the temporal conv's zero padding.
    x_cv = jnp.swapaxes(x, 2, 3).reshape(N, C_in * V, T)
    x_cv = jnp.pad(x_cv, ((0, 0), (0, 0), (pad, pad)))
    x_g = (x_cv.reshape(n_grid, block_n, C_in * V, T_pad)
               .transpose(0, 2, 1, 3)
               .reshape(n_grid, C_in * V, block_n * T_pad)
               .astype(p['compute_dtype']))

    kernel = functools.partial(_stblock_kernel, n_blk=block_n, v=V,
                               c_out=C_out, t_pad=T_pad, t_k=t_k)

    def build(single_buffer_consts):
        const_kw = ({'pipeline_mode': pl.Buffered(1)}
                    if single_buffer_consts else {})
        return pl.pallas_call(
            kernel,
            out_shape=jax.ShapeDtypeStruct((N, C_out, lanes), p['out_dtype']),
            grid=(n_grid,),
            in_specs=[
                pl.BlockSpec((1, C_in * V, block_n * T_pad),
                             lambda i: (i, 0, 0)),
                pl.BlockSpec((V * C_out, C_in * V), lambda i: (0, 0),
                             **const_kw),
                pl.BlockSpec((C_out, t_k * C_out), lambda i: (0, 0),
                             **const_kw),
                pl.BlockSpec((C_out, lanes), lambda i: (0, 0), **const_kw),
            ],
            out_specs=pl.BlockSpec((block_n, C_out, lanes),
                                   lambda i: (i, 0, 0)),
            scratch_shapes=[
                pltpu.VMEM((V * C_out, block_n * T_pad), p['compute_dtype']),
                pltpu.VMEM((t_k * C_out, lanes), p['compute_dtype']),
            ],
            compiler_params=pltpu.CompilerParams(
                dimension_semantics=("parallel",),
                vmem_limit_bytes=vmem_limit),
        )

    args = (x_g, p['g'], p['wt2'], p['bias_full'])
    try:
        out_flat = build(True)(*args)
    except Exception:
        # pl.Buffered(1) single-buffering unsupported here -> default buffering.
        out_flat = build(False)(*args)

    out = out_flat.reshape(N, C_out, V, T_pad)[..., :T_out]    # drop junk tail
    if module_layout:
        # NOTE: V-last layout kept only for parity with the PyTorch module; a
        # downstream Pallas consumer should take the lane-dense (..., V, T_out)
        # layout (module_layout=False) and skip this extra HBM round trip.
        out = jnp.swapaxes(out, 2, 3)                          # (N, C_out, T_out, V)
    return out


def stblock_reference(x, adj, ws, bs, wt, bt, *, out_features, len_A,
                      t_kernel=9, t_stride=1):
    """Pure-JAX reference mirroring the PyTorch forward."""
    N, C_in, T, V = x.shape
    C_out, K = out_features, len_A
    pad = (t_kernel - 1) // 2
    hp = jax.lax.Precision.HIGHEST
    xw = jnp.einsum('oc,nctv->notv', ws, x, precision=hp)
    xw = xw + bs[None, :, None, None]
    xw = xw.reshape(N, C_out, K, T, V)
    spat = jnp.einsum('ncktv,kvw->nctw', xw, adj, precision=hp)
    out = lax.conv_general_dilated(
        spat, wt[..., None], window_strides=(t_stride, 1),
        padding=((pad, pad), (0, 0)),
        dimension_numbers=('NCHW', 'OIHW', 'NCHW'), precision=hp)
    return out + bt[None, :, None, None]


if __name__ == "__main__":
    # small synthetic shapes consistent with the module
    N, C_in, C_out, K, T, V = 2, 4, 8, 3, 16, 16
    t_kernel, t_stride = 9, 1

    key = jax.random.PRNGKey(0)
    k1, k2, k3, k4, k5, k6 = jax.random.split(key, 6)

    x = jax.random.normal(k1, (N, C_in, T, V), jnp.float32)
    adj_raw = jax.random.uniform(k2, (K, V, V), jnp.float32)
    adj = adj_raw / adj_raw.sum(axis=-1, keepdims=True)           # row-normalized

    ws = 0.2 * jax.random.normal(k3, (C_out * K, C_in), jnp.float32)  # 1x1 conv
    bs = 0.1 * jax.random.normal(k4, (C_out * K,), jnp.float32)
    wt = 0.2 * jax.random.normal(k5, (C_out, C_out, t_kernel), jnp.float32)
    bt = 0.1 * jax.random.normal(k6, (C_out,), jnp.float32)

    # derived parameters are built once, outside the per-forward path
    params = precompute_stblock_params(
        adj, ws, bs, wt, bt, out_features=C_out, len_A=K, seq_len=T,
        t_kernel=t_kernel, t_stride=t_stride)

    out = stblock_forward(x, params)
    out = jax.block_until_ready(out)

    ref = stblock_reference(x, adj, ws, bs, wt, bt, out_features=C_out,
                            len_A=K, t_kernel=t_kernel, t_stride=t_stride)

    pad = (t_kernel - 1) // 2
    T_out = (T + 2 * pad - t_kernel) // t_stride + 1
    assert out.shape == (N, C_out, T_out, V), out.shape
    np.testing.assert_allclose(np.asarray(out.astype(jnp.float32)),
                               np.asarray(ref), rtol=2e-2, atol=2e-2)
    print("KERNEL_OK")
</pallas_src>

<mosaic_0001>
module attributes {stable_mosaic.version = 11 : i64} {
  func.func @_stblock_kernel(%arg0: i32, %arg1: memref<1x64x24xbf16, #tpu.memory_space<vmem>>, %arg2: memref<128x64xbf16, #tpu.memory_space<vmem>>, %arg3: memref<8x72xbf16, #tpu.memory_space<vmem>>, %arg4: memref<8x384xf32, #tpu.memory_space<vmem>>, %arg5: memref<1x8x384xbf16, #tpu.memory_space<vmem>>, %arg6: memref<128x24xbf16, #tpu.memory_space<vmem>>, %arg7: memref<72x384xbf16, #tpu.memory_space<vmem>>) attributes {dimension_semantics = [#tpu.dimension_semantics<parallel>], iteration_bounds = array<i64: 2>, scalar_prefetch = 0 : i64, scratch_operands = 2 : i64, tpu.core_type = #tpu.core_type<tc>, window_params = [{transform_indices = @transform_0, window_bounds = array<i64: 1, 64, 24>}, {pipeline_mode = #tpu.pipeline_mode<synchronous>, transform_indices = @transform_1, window_bounds = array<i64: 128, 64>}, {pipeline_mode = #tpu.pipeline_mode<synchronous>, transform_indices = @transform_2, window_bounds = array<i64: 8, 72>}, {pipeline_mode = #tpu.pipeline_mode<synchronous>, transform_indices = @transform_3, window_bounds = array<i64: 8, 384>}, {transform_indices = @transform_4, window_bounds = array<i64: 1, 8, 384>}]} {
    %c0 = arith.constant 0 : index
    %c0_0 = arith.constant 0 : index
    %0 = vector.load %arg2[%c0, %c0_0] : memref<128x64xbf16, #tpu.memory_space<vmem>>, vector<128x64xbf16>
    %c0_1 = arith.constant 0 : index
    %c0_2 = arith.constant 0 : index
    %c0_3 = arith.constant 0 : index
    %1 = vector.load %arg1[%c0_1, %c0_2, %c0_3] : memref<1x64x24xbf16, #tpu.memory_space<vmem>>, vector<1x64x24xbf16>
    %2 = vector.shape_cast %1 : vector<1x64x24xbf16> to vector<64x24xbf16>
    %cst = arith.constant dense<0.000000e+00> : vector<128x24xf32>
    %3 = tpu.matmul %0, %2, %cst {dimension_numbers = #tpu.dot_dimension_numbers<[1], [0], [0], [1], [0, 0, 1, 1], [], []>} : vector<128x64xbf16>, vector<64x24xbf16>, vector<128x24xf32> -> vector<128x24xf32>
    %4 = arith.truncf %3 : vector<128x24xf32> to vector<128x24xbf16>
    %c0_4 = arith.constant 0 : index
    %c0_5 = arith.constant 0 : index
    %5 = vector.load %arg6[%c0_4, %c0_5] : memref<128x24xbf16, #tpu.memory_space<vmem>>, vector<128x24xbf16>
    tpu.vector_store %arg6[%c0_4, %c0_5], %4 {strides = array<i32>} : memref<128x24xbf16, #tpu.memory_space<vmem>>, vector<128x24xbf16>,
    %c0_6 = arith.constant 0 : index
    %c0_7 = arith.constant 0 : index
    %6 = vector.load %arg3[%c0_6, %c0_7] : memref<8x72xbf16, #tpu.memory_space<vmem>>, vector<8x72xbf16>
    %c0_8 = arith.constant 0 : index
    %c0_9 = arith.constant 0 : index
    %7 = vector.load %arg4[%c0_8, %c0_9] : memref<8x384xf32, #tpu.memory_space<vmem>>, vector<8x384xf32>
    %c0_10 = arith.constant 0 : index
    %c0_11 = arith.constant 0 : index
    %8 = vector.load %arg6[%c0_10, %c0_11] : memref<128x24xbf16, #tpu.memory_space<vmem>>, vector<8x24xbf16>
    %c0_12 = arith.constant 0 : index
    %c0_13 = arith.constant 0 : index
    %9 = vector.load %arg7[%c0_12, %c0_13] : memref<72x384xbf16, #tpu.memory_space<vmem>>, vector<8x24xbf16>
    tpu.vector_store %arg7[%c0_12, %c0_13], %8 {strides = array<i32>} : memref<72x384xbf16, #tpu.memory_space<vmem>>, vector<8x24xbf16>,
    %c8 = arith.constant 8 : index
    %c0_14 = arith.constant 0 : index
    %10 = vector.load %arg6[%c8, %c0_14] : memref<128x24xbf16, #tpu.memory_space<vmem>>, vector<8x24xbf16>
    %c0_15 = arith.constant 0 : index
    %c24 = arith.constant 24 : index
    %11 = vector.load %arg7[%c0_15, %c24] : memref<72x384xbf16, #tpu.memory_space<vmem>>, vector<8x24xbf16>
    tpu.vector_store %arg7[%c0_15, %c24], %10 {strides = array<i32>} : memref<72x384xbf16, #tpu.memory_space<vmem>>, vector<8x24xbf16>,
    %c16 = arith.constant 16 : index
    %c0_16 = arith.constant 0 : index
    %12 = vector.load %arg6[%c16, %c0_16] : memref<128x24xbf16, #tpu.memory_space<vmem>>, vector<8x24xbf16>
    %c0_17 = arith.constant 0 : index
    %c48 = arith.constant 48 : index
    %13 = vector.load %arg7[%c0_17, %c48] : memref<72x384xbf16, #tpu.memory_space<vmem>>, vector<8x24xbf16>
    tpu.vector_store %arg7[%c0_17, %c48], %12 {strides = array<i32>} : memref<72x384xbf16, #tpu.memory_space<vmem>>, vector<8x24xbf16>,
    %c24_18 = arith.constant 24 : index
    %c0_19 = arith.constant 0 : index
    %14 = vector.load %arg6[%c24_18, %c0_19] : memref<128x24xbf16, #tpu.memory_space<vmem>>, vector<8x24xbf16>
    %c0_20 = arith.constant 0 : index
    %c72 = arith.constant 72 : index
    %15 = vector.load %arg7[%c0_20, %c72] : memref<72x384xbf16, #tpu.memory_space<vmem>>, vector<8x24xbf16>
    tpu.vector_store %arg7[%c0_20, %c72], %14 {strides = array<i32>} : memref<72x384xbf16, #tpu.memory_space<vmem>>, vector<8x24xbf16>,
    %c32 = arith.constant 32 : index
    %c0_21 = arith.constant 0 : index
    %16 = vector.load %arg6[%c32, %c0_21] : memref<128x24xbf16, #tpu.memory_space<vmem>>, vector<8x24xbf16>
    %c0_22 = arith.constant 0 : index
    %c96 = arith.constant 96 : index
    %17 = vector.load %arg7[%c0_22, %c96] : memref<72x384xbf16, #tpu.memory_space<vmem>>, vector<8x24xbf16>
    tpu.vector_store %arg7[%c0_22, %c96], %16 {strides = array<i32>} : memref<72x384xbf16, #tpu.memory_space<vmem>>, vector<8x24xbf16>,
    %c40 = arith.constant 40 : index
    %c0_23 = arith.constant 0 : index
    %18 = vector.load %arg6[%c40, %c0_23] : memref<128x24xbf16, #tpu.memory_space<vmem>>, vector<8x24xbf16>
    %c0_24 = arith.constant 0 : index
    %c120 = arith.constant 120 : index
    %19 = vector.load %arg7[%c0_24, %c120] : memref<72x384xbf16, #tpu.memory_space<vmem>>, vector<8x24xbf16>
    tpu.vector_store %arg7[%c0_24, %c120], %18 {strides = array<i32>} : memref<72x384xbf16, #tpu.memory_space<vmem>>, vector<8x24xbf16>,
    %c48_25 = arith.constant 48 : index
    %c0_26 = arith.constant 0 : index
    %20 = vector.load %arg6[%c48_25, %c0_26] : memref<128x24xbf16, #tpu.memory_space<vmem>>, vector<8x24xbf16>
    %c0_27 = arith.constant 0 : index
    %c144 = arith.constant 144 : index
    %21 = vector.load %arg7[%c0_27, %c144] : memref<72x384xbf16, #tpu.memory_space<vmem>>, vector<8x24xbf16>
    tpu.vector_store %arg7[%c0_27, %c144], %20 {strides = array<i32>} : memref<72x384xbf16, #tpu.memory_space<vmem>>, vector<8x24xbf16>,
    %c56 = arith.constant 56 : index
    %c0_28 = arith.constant 0 : index
    %22 = vector.load %arg6[%c56, %c0_28] : memref<128x24xbf16, #tpu.memory_space<vmem>>, vector<8x24xbf16>
    %c0_29 = arith.constant 0 : index
    %c168 = arith.constant 168 : index
    %23 = vector.load %arg7[%c0_29, %c168] : memref<72x384xbf16, #tpu.memory_space<vmem>>, vector<8x24xbf16>
    tpu.vector_store %arg7[%c0_29, %c168], %22 {strides = array<i32>} : memref<72x384xbf16, #tpu.memory_space<vmem>>, vector<8x24xbf16>,
    %c64 = arith.constant 64 : index
    %c0_30 = arith.constant 0 : index
    %24 = vector.load %arg6[%c64, %c0_30] : memref<128x24xbf16, #tpu.memory_space<vmem>>, vector<8x24xbf16>
    %c0_31 = arith.constant 0 : index
    %c192 = arith.constant 192 : index
    %25 = vector.load %arg7[%c0_31, %c192] : memref<72x384xbf16, #tpu.memory_space<vmem>>, vector<8x24xbf16>
    tpu.vector_store %arg7[%c0_31, %c192], %24 {strides = array<i32>} : memref<72x384xbf16, #tpu.memory_space<vmem>>, vector<8x24xbf16>,
    %c72_32 = arith.constant 72 : index
    %c0_33 = arith.constant 0 : index
    %26 = vector.load %arg6[%c72_32, %c0_33] : memref<128x24xbf16, #tpu.memory_space<vmem>>, vector<8x24xbf16>
    %c0_34 = arith.constant 0 : index
    %c216 = arith.constant 216 : index
    %27 = vector.load %arg7[%c0_34, %c216] : memref<72x384xbf16, #tpu.memory_space<vmem>>, vector<8x24xbf16>
    tpu.vector_store %arg7[%c0_34, %c216], %26 {strides = array<i32>} : memref<72x384xbf16, #tpu.memory_space<vmem>>, vector<8x24xbf16>,
    %c80 = arith.constant 80 : index
    %c0_35 = arith.constant 0 : index
    %28 = vector.load %arg6[%c80, %c0_35] : memref<128x24xbf16, #tpu.memory_space<vmem>>, vector<8x24xbf16>
    %c0_36 = arith.constant 0 : index
    %c240 = arith.constant 240 : index
    %29 = vector.load %arg7[%c0_36, %c240] : memref<72x384xbf16, #tpu.memory_space<vmem>>, vector<8x24xbf16>
    tpu.vector_store %arg7[%c0_36, %c240], %28 {strides = array<i32>} : memref<72x384xbf16, #tpu.memory_space<vmem>>, vector<8x24xbf16>,
    %c88 = arith.constant 88 : index
    %c0_37 = arith.constant 0 : index
    %30 = vector.load %arg6[%c88, %c0_37] : memref<128x24xbf16, #tpu.memory_space<vmem>>, vector<8x24xbf16>
    %c0_38 = arith.constant 0 : index
    %c264 = arith.constant 264 : index
    %31 = vector.load %arg7[%c0_38, %c264] : memref<72x384xbf16, #tpu.memory_space<vmem>>, vector<8x24xbf16>
    tpu.vector_store %arg7[%c0_38, %c264], %30 {strides = array<i32>} : memref<72x384xbf16, #tpu.memory_space<vmem>>, vector<8x24xbf16>,
    %c96_39 = arith.constant 96 : index
    %c0_40 = arith.constant 0 : index
    %32 = vector.load %arg6[%c96_39, %c0_40] : memref<128x24xbf16, #tpu.memory_space<vmem>>, vector<8x24xbf16>
    %c0_41 = arith.constant 0 : index
    %c288 = arith.constant 288 : index
    %33 = vector.load %arg7[%c0_41, %c288] : memref<72x384xbf16, #tpu.memory_space<vmem>>, vector<8x24xbf16>
    tpu.vector_store %arg7[%c0_41, %c288], %32 {strides = array<i32>} : memref<72x384xbf16, #tpu.memory_space<vmem>>, vector<8x24xbf16>,
    %c104 = arith.constant 104 : index
    %c0_42 = arith.constant 0 : index
    %34 = vector.load %arg6[%c104, %c0_42] : memref<128x24xbf16, #tpu.memory_space<vmem>>, vector<8x24xbf16>
    %c0_43 = arith.constant 0 : index
    %c312 = arith.constant 312 : index
    %35 = vector.load %arg7[%c0_43, %c312] : memref<72x384xbf16, #tpu.memory_space<vmem>>, vector<8x24xbf16>
    tpu.vector_store %arg7[%c0_43, %c312], %34 {strides = array<i32>} : memref<72x384xbf16, #tpu.memory_space<vmem>>, vector<8x24xbf16>,
    %c112 = arith.constant 112 : index
    %c0_44 = arith.constant 0 : index
    %36 = vector.load %arg6[%c112, %c0_44] : memref<128x24xbf16, #tpu.memory_space<vmem>>, vector<8x24xbf16>
    %c0_45 = arith.constant 0 : index
    %c336 = arith.constant 336 : index
    %37 = vector.load %arg7[%c0_45, %c336] : memref<72x384xbf16, #tpu.memory_space<vmem>>, vector<8x24xbf16>
    tpu.vector_store %arg7[%c0_45, %c336], %36 {strides = array<i32>} : memref<72x384xbf16, #tpu.memory_space<vmem>>, vector<8x24xbf16>,
    %c120_46 = arith.constant 120 : index
    %c0_47 = arith.constant 0 : index
    %38 = vector.load %arg6[%c120_46, %c0_47] : memref<128x24xbf16, #tpu.memory_space<vmem>>, vector<8x24xbf16>
    %c0_48 = arith.constant 0 : index
    %c360 = arith.constant 360 : index
    %39 = vector.load %arg7[%c0_48, %c360] : memref<72x384xbf16, #tpu.memory_space<vmem>>, vector<8x24xbf16>
    tpu.vector_store %arg7[%c0_48, %c360], %38 {strides = array<i32>} : memref<72x384xbf16, #tpu.memory_space<vmem>>, vector<8x24xbf16>,
    %c0_49 = arith.constant 0 : index
    %c0_50 = arith.constant 0 : index
    %40 = vector.load %arg7[%c0_49, %c0_50] : memref<72x384xbf16, #tpu.memory_space<vmem>>, vector<8x384xbf16>
    %41 = vector.extract_strided_slice %40 {offsets = [0, 1], sizes = [8, 383], strides = [1, 1]} : vector<8x384xbf16> to vector<8x383xbf16>
    %c8_51 = arith.constant 8 : index
    %c0_52 = arith.constant 0 : index
    %42 = vector.load %arg7[%c8_51, %c0_52] : memref<72x384xbf16, #tpu.memory_space<vmem>>, vector<8x383xbf16>
    tpu.vector_store %arg7[%c8_51, %c0_52], %41 {strides = array<i32>} : memref<72x384xbf16, #tpu.memory_space<vmem>>, vector<8x383xbf16>,
    %cst_53 = arith.constant 0.000000e+00 : bf16
    %43 = vector.broadcast %cst_53 : bf16 to vector<8x1xbf16>
    %c8_54 = arith.constant 8 : index
    %c383 = arith.constant 383 : index
    %44 = vector.load %arg7[%c8_54, %c383] : memref<72x384xbf16, #tpu.memory_space<vmem>>, vector<8x1xbf16>
    tpu.vector_store %arg7[%c8_54, %c383], %43 {strides = array<i32>} : memref<72x384xbf16, #tpu.memory_space<vmem>>, vector<8x1xbf16>,
    %45 = vector.extract_strided_slice %40 {offsets = [0, 2], sizes = [8, 382], strides = [1, 1]} : vector<8x384xbf16> to vector<8x382xbf16>
    %c16_55 = arith.constant 16 : index
    %c0_56 = arith.constant 0 : index
    %46 = vector.load %arg7[%c16_55, %c0_56] : memref<72x384xbf16, #tpu.memory_space<vmem>>, vector<8x382xbf16>
    tpu.vector_store %arg7[%c16_55, %c0_56], %45 {strides = array<i32>} : memref<72x384xbf16, #tpu.memory_space<vmem>>, vector<8x382xbf16>,
    %cst_57 = arith.constant 0.000000e+00 : bf16
    %47 = vector.broadcast %cst_57 : bf16 to vector<8x2xbf16>
    %c16_58 = arith.constant 16 : index
    %c382 = arith.constant 382 : index
    %48 = vector.load %arg7[%c16_58, %c382] : memref<72x384xbf16, #tpu.memory_space<vmem>>, vector<8x2xbf16>
    tpu.vector_store %arg7[%c16_58, %c382], %47 {strides = array<i32>} : memref<72x384xbf16, #tpu.memory_space<vmem>>, vector<8x2xbf16>,
    %49 = vector.extract_strided_slice %40 {offsets = [0, 3], sizes = [8, 381], strides = [1, 1]} : vector<8x384xbf16> to vector<8x381xbf16>
    %c24_59 = arith.constant 24 : index
    %c0_60 = arith.constant 0 : index
    %50 = vector.load %arg7[%c24_59, %c0_60] : memref<72x384xbf16, #tpu.memory_space<vmem>>, vector<8x381xbf16>
    tpu.vector_store %arg7[%c24_59, %c0_60], %49 {strides = array<i32>} : memref<72x384xbf16, #tpu.memory_space<vmem>>, vector<8x381xbf16>,
    %cst_61 = arith.constant 0.000000e+00 : bf16
    %51 = vector.broadcast %cst_61 : bf16 to vector<8x3xbf16>
    %c24_62 = arith.constant 24 : index
    %c381 = arith.constant 381 : index
    %52 = vector.load %arg7[%c24_62, %c381] : memref<72x384xbf16, #tpu.memory_space<vmem>>, vector<8x3xbf16>
    tpu.vector_store %arg7[%c24_62, %c381], %51 {strides = array<i32>} : memref<72x384xbf16, #tpu.memory_space<vmem>>, vector<8x3xbf16>,
    %53 = vector.extract_strided_slice %40 {offsets = [0, 4], sizes = [8, 380], strides = [1, 1]} : vector<8x384xbf16> to vector<8x380xbf16>
    %c32_63 = arith.constant 32 : index
    %c0_64 = arith.constant 0 : index
    %54 = vector.load %arg7[%c32_63, %c0_64] : memref<72x384xbf16, #tpu.memory_space<vmem>>, vector<8x380xbf16>
    tpu.vector_store %arg7[%c32_63, %c0_64], %53 {strides = array<i32>} : memref<72x384xbf16, #tpu.memory_space<vmem>>, vector<8x380xbf16>,
    %cst_65 = arith.constant 0.000000e+00 : bf16
    %55 = vector.broadcast %cst_65 : bf16 to vector<8x4xbf16>
    %c32_66 = arith.constant 32 : index
    %c380 = arith.constant 380 : index
    %56 = vector.load %arg7[%c32_66, %c380] : memref<72x384xbf16, #tpu.memory_space<vmem>>, vector<8x4xbf16>
    tpu.vector_store %arg7[%c32_66, %c380], %55 {strides = array<i32>} : memref<72x384xbf16, #tpu.memory_space<vmem>>, vector<8x4xbf16>,
    %57 = vector.extract_strided_slice %40 {offsets = [0, 5], sizes = [8, 379], strides = [1, 1]} : vector<8x384xbf16> to vector<8x379xbf16>
    %c40_67 = arith.constant 40 : index
    %c0_68 = arith.constant 0 : index
    %58 = vector.load %arg7[%c40_67, %c0_68] : memref<72x384xbf16, #tpu.memory_space<vmem>>, vector<8x379xbf16>
    tpu.vector_store %arg7[%c40_67, %c0_68], %57 {strides = array<i32>} : memref<72x384xbf16, #tpu.memory_space<vmem>>, vector<8x379xbf16>,
    %cst_69 = arith.constant 0.000000e+00 : bf16
    %59 = vector.broadcast %cst_69 : bf16 to vector<8x5xbf16>
    %c40_70 = arith.constant 40 : index
    %c379 = arith.constant 379 : index
    %60 = vector.load %arg7[%c40_70, %c379] : memref<72x384xbf16, #tpu.memory_space<vmem>>, vector<8x5xbf16>
    tpu.vector_store %arg7[%c40_70, %c379], %59 {strides = array<i32>} : memref<72x384xbf16, #tpu.memory_space<vmem>>, vector<8x5xbf16>,
    %61 = vector.extract_strided_slice %40 {offsets = [0, 6], sizes = [8, 378], strides = [1, 1]} : vector<8x384xbf16> to vector<8x378xbf16>
    %c48_71 = arith.constant 48 : index
    %c0_72 = arith.constant 0 : index
    %62 = vector.load %arg7[%c48_71, %c0_72] : memref<72x384xbf16, #tpu.memory_space<vmem>>, vector<8x378xbf16>
    tpu.vector_store %arg7[%c48_71, %c0_72], %61 {strides = array<i32>} : memref<72x384xbf16, #tpu.memory_space<vmem>>, vector<8x378xbf16>,
    %cst_73 = arith.constant 0.000000e+00 : bf16
    %63 = vector.broadcast %cst_73 : bf16 to vector<8x6xbf16>
    %c48_74 = arith.constant 48 : index
    %c378 = arith.constant 378 : index
    %64 = vector.load %arg7[%c48_74, %c378] : memref<72x384xbf16, #tpu.memory_space<vmem>>, vector<8x6xbf16>
    tpu.vector_store %arg7[%c48_74, %c378], %63 {strides = array<i32>} : memref<72x384xbf16, #tpu.memory_space<vmem>>, vector<8x6xbf16>,
    %65 = vector.extract_strided_slice %40 {offsets = [0, 7], sizes = [8, 377], strides = [1, 1]} : vector<8x384xbf16> to vector<8x377xbf16>
    %c56_75 = arith.constant 56 : index
    %c0_76 = arith.constant 0 : index
    %66 = vector.load %arg7[%c56_75, %c0_76] : memref<72x384xbf16, #tpu.memory_space<vmem>>, vector<8x377xbf16>
    tpu.vector_store %arg7[%c56_75, %c0_76], %65 {strides = array<i32>} : memref<72x384xbf16, #tpu.memory_space<vmem>>, vector<8x377xbf16>,
    %cst_77 = arith.constant 0.000000e+00 : bf16
    %67 = vector.broadcast %cst_77 : bf16 to vector<8x7xbf16>
    %c56_78 = arith.constant 56 : index
    %c377 = arith.constant 377 : index
    %68 = vector.load %arg7[%c56_78, %c377] : memref<72x384xbf16, #tpu.memory_space<vmem>>, vector<8x7xbf16>
    tpu.vector_store %arg7[%c56_78, %c377], %67 {strides = array<i32>} : memref<72x384xbf16, #tpu.memory_space<vmem>>, vector<8x7xbf16>,
    %69 = vector.extract_strided_slice %40 {offsets = [0, 8], sizes = [8, 376], strides = [1, 1]} : vector<8x384xbf16> to vector<8x376xbf16>
    %c64_79 = arith.constant 64 : index
    %c0_80 = arith.constant 0 : index
    %70 = vector.load %arg7[%c64_79, %c0_80] : memref<72x384xbf16, #tpu.memory_space<vmem>>, vector<8x376xbf16>
    tpu.vector_store %arg7[%c64_79, %c0_80], %69 {strides = array<i32>} : memref<72x384xbf16, #tpu.memory_space<vmem>>, vector<8x376xbf16>,
    %cst_81 = arith.constant 0.000000e+00 : bf16
    %71 = vector.broadcast %cst_81 : bf16 to vector<8x8xbf16>
    %c64_82 = arith.constant 64 : index
    %c376 = arith.constant 376 : index
    %72 = vector.load %arg7[%c64_82, %c376] : memref<72x384xbf16, #tpu.memory_space<vmem>>, vector<8x8xbf16>
    tpu.vector_store %arg7[%c64_82, %c376], %71 {strides = array<i32>} : memref<72x384xbf16, #tpu.memory_space<vmem>>, vector<8x8xbf16>,
    %c0_83 = arith.constant 0 : index
    %c0_84 = arith.constant 0 : index
    %73 = vector.load %arg7[%c0_83, %c0_84] : memref<72x384xbf16, #tpu.memory_space<vmem>>, vector<72x384xbf16>
    %cst_85 = arith.constant dense<0.000000e+00> : vector<8x384xf32>
    %74 = tpu.matmul %6, %73, %cst_85 {dimension_numbers = #tpu.dot_dimension_numbers<[1], [0], [0], [1], [0, 0, 1, 1], [], []>} : vector<8x72xbf16>, vector<72x384xbf16>, vector<8x384xf32> -> vector<8x384xf32>
    %75 = arith.addf %74, %7 : vector<8x384xf32>
    %76 = arith.truncf %75 : vector<8x384xf32> to vector<8x384xbf16>
    %c0_86 = arith.constant 0 : index
    %c0_87 = arith.constant 0 : index
    %c0_88 = arith.constant 0 : index
    %77 = vector.load %arg5[%c0_86, %c0_87, %c0_88] : memref<1x8x384xbf16, #tpu.memory_space<vmem>>, vector<1x8x384xbf16>
    %78 = vector.shape_cast %77 : vector<1x8x384xbf16> to vector<8x384xbf16>
    %79 = vector.shape_cast %76 : vector<8x384xbf16> to vector<1x8x384xbf16>
    tpu.vector_store %arg5[%c0_86, %c0_87, %c0_88], %79 {strides = array<i32>} : memref<1x8x384xbf16, #tpu.memory_space<vmem>>, vector<1x8x384xbf16>,
    return
  }
  func.func @transform_0(%arg0: i32) -> (i32, i32, i32) {
    %c0_i32 = arith.constant 0 : i32
    %c0_i32_0 = arith.constant 0 : i32
    %c0_i32_1 = arith.constant 0 : i32
    return %arg0, %c0_i32, %c0_i32_0 : i32, i32, i32
  }
  func.func @transform_1(%arg0: i32) -> (i32, i32) {
    %c0_i32 = arith.constant 0 : i32
    %c0_i32_0 = arith.constant 0 : i32
    %c0_i32_1 = arith.constant 0 : i32
    return %c0_i32, %c0_i32_0 : i32, i32
  }
  func.func @transform_2(%arg0: i32) -> (i32, i32) {
    %c0_i32 = arith.constant 0 : i32
    %c0_i32_0 = arith.constant 0 : i32
    %c0_i32_1 = arith.constant 0 : i32
    return %c0_i32, %c0_i32_0 : i32, i32
  }
  func.func @transform_3(%arg0: i32) -> (i32, i32) {
    %c0_i32 = arith.constant 0 : i32
    %c0_i32_0 = arith.constant 0 : i32
    %c0_i32_1 = arith.constant 0 : i32
    return %c0_i32, %c0_i32_0 : i32, i32
  }
  func.func @transform_4(%arg0: i32) -> (i32, i32, i32) {
    %c0_i32 = arith.constant 0 : i32
    %c0_i32_0 = arith.constant 0 : i32
    %c0_i32_1 = arith.constant 0 : i32
    return %arg0, %c0_i32, %c0_i32_0 : i32, i32, i32
  }
}

module attributes {stable_mosaic.version = 11 : i64} {
  func.func @_stblock_kernel(%arg0: i32, %arg1: memref<1x64x24xbf16, #tpu.memory_space<vmem>>, %arg2: memref<128x64xbf16, #tpu.memory_space<vmem>>, %arg3: memref<8x72xbf16, #tpu.memory_space<vmem>>, %arg4: memref<8x384xf32, #tpu.memory_space<vmem>>, %arg5: memref<1x8x384xbf16, #tpu.memory_space<vmem>>, %arg6: memref<128x24xbf16, #tpu.memory_space<vmem>>, %arg7: memref<72x384xbf16, #tpu.memory_space<vmem>>) attributes {dimension_semantics = [#tpu.dimension_semantics<parallel>], iteration_bounds = array<i64: 2>, scalar_prefetch = 0 : i64, scratch_operands = 2 : i64, tpu.core_type = #tpu.core_type<tc>, window_params = [{transform_indices = @transform_0, window_bounds = array<i64: 1, 64, 24>}, {pipeline_mode = #tpu.pipeline_mode<synchronous>, transform_indices = @transform_1, window_bounds = array<i64: 128, 64>}, {pipeline_mode = #tpu.pipeline_mode<synchronous>, transform_indices = @transform_2, window_bounds = array<i64: 8, 72>}, {pipeline_mode = #tpu.pipeline_mode<synchronous>, transform_indices = @transform_3, window_bounds = array<i64: 8, 384>}, {transform_indices = @transform_4, window_bounds = array<i64: 1, 8, 384>}]} {
    %c0 = arith.constant 0 : index
    %c0_0 = arith.constant 0 : index
    %0 = vector.load %arg2[%c0, %c0_0] : memref<128x64xbf16, #tpu.memory_space<vmem>>, vector<128x64xbf16>
    %c0_1 = arith.constant 0 : index
    %c0_2 = arith.constant 0 : index
    %c0_3 = arith.constant 0 : index
    %1 = vector.load %arg1[%c0_1, %c0_2, %c0_3] : memref<1x64x24xbf16, #tpu.memory_space<vmem>>, vector<1x64x24xbf16>
    %2 = vector.shape_cast %1 : vector<1x64x24xbf16> to vector<64x24xbf16>
    %cst = arith.constant dense<0.000000e+00> : vector<128x24xf32>
    %3 = tpu.matmul %0, %2, %cst {dimension_numbers = #tpu.dot_dimension_numbers<[1], [0], [0], [1], [0, 0, 1, 1], [], []>} : vector<128x64xbf16>, vector<64x24xbf16>, vector<128x24xf32> -> vector<128x24xf32>
    %4 = arith.truncf %3 : vector<128x24xf32> to vector<128x24xbf16>
    %c0_4 = arith.constant 0 : index
    %c0_5 = arith.constant 0 : index
    %5 = vector.load %arg6[%c0_4, %c0_5] : memref<128x24xbf16, #tpu.memory_space<vmem>>, vector<128x24xbf16>
    tpu.vector_store %arg6[%c0_4, %c0_5], %4 {strides = array<i32>} : memref<128x24xbf16, #tpu.memory_space<vmem>>, vector<128x24xbf16>,
    %c0_6 = arith.constant 0 : index
    %c0_7 = arith.constant 0 : index
    %6 = vector.load %arg3[%c0_6, %c0_7] : memref<8x72xbf16, #tpu.memory_space<vmem>>, vector<8x72xbf16>
    %c0_8 = arith.constant 0 : index
    %c0_9 = arith.constant 0 : index
    %7 = vector.load %arg4[%c0_8, %c0_9] : memref<8x384xf32, #tpu.memory_space<vmem>>, vector<8x384xf32>
    %c0_10 = arith.constant 0 : index
    %c0_11 = arith.constant 0 : index
    %8 = vector.load %arg6[%c0_10, %c0_11] : memref<128x24xbf16, #tpu.memory_space<vmem>>, vector<8x24xbf16>
    %c0_12 = arith.constant 0 : index
    %c0_13 = arith.constant 0 : index
    %9 = vector.load %arg7[%c0_12, %c0_13] : memref<72x384xbf16, #tpu.memory_space<vmem>>, vector<8x24xbf16>
    tpu.vector_store %arg7[%c0_12, %c0_13], %8 {strides = array<i32>} : memref<72x384xbf16, #tpu.memory_space<vmem>>, vector<8x24xbf16>,
    %c8 = arith.constant 8 : index
    %c0_14 = arith.constant 0 : index
    %10 = vector.load %arg6[%c8, %c0_14] : memref<128x24xbf16, #tpu.memory_space<vmem>>, vector<8x24xbf16>
    %c0_15 = arith.constant 0 : index
    %c24 = arith.constant 24 : index
    %11 = vector.load %arg7[%c0_15, %c24] : memref<72x384xbf16, #tpu.memory_space<vmem>>, vector<8x24xbf16>
    tpu.vector_store %arg7[%c0_15, %c24], %10 {strides = array<i32>} : memref<72x384xbf16, #tpu.memory_space<vmem>>, vector<8x24xbf16>,
    %c16 = arith.constant 16 : index
    %c0_16 = arith.constant 0 : index
    %12 = vector.load %arg6[%c16, %c0_16] : memref<128x24xbf16, #tpu.memory_space<vmem>>, vector<8x24xbf16>
    %c0_17 = arith.constant 0 : index
    %c48 = arith.constant 48 : index
    %13 = vector.load %arg7[%c0_17, %c48] : memref<72x384xbf16, #tpu.memory_space<vmem>>, vector<8x24xbf16>
    tpu.vector_store %arg7[%c0_17, %c48], %12 {strides = array<i32>} : memref<72x384xbf16, #tpu.memory_space<vmem>>, vector<8x24xbf16>,
    %c24_18 = arith.constant 24 : index
    %c0_19 = arith.constant 0 : index
    %14 = vector.load %arg6[%c24_18, %c0_19] : memref<128x24xbf16, #tpu.memory_space<vmem>>, vector<8x24xbf16>
    %c0_20 = arith.constant 0 : index
    %c72 = arith.constant 72 : index
    %15 = vector.load %arg7[%c0_20, %c72] : memref<72x384xbf16, #tpu.memory_space<vmem>>, vector<8x24xbf16>
    tpu.vector_store %arg7[%c0_20, %c72], %14 {strides = array<i32>} : memref<72x384xbf16, #tpu.memory_space<vmem>>, vector<8x24xbf16>,
    %c32 = arith.constant 32 : index
    %c0_21 = arith.constant 0 : index
    %16 = vector.load %arg6[%c32, %c0_21] : memref<128x24xbf16, #tpu.memory_space<vmem>>, vector<8x24xbf16>
    %c0_22 = arith.constant 0 : index
    %c96 = arith.constant 96 : index
    %17 = vector.load %arg7[%c0_22, %c96] : memref<72x384xbf16, #tpu.memory_space<vmem>>, vector<8x24xbf16>
    tpu.vector_store %arg7[%c0_22, %c96], %16 {strides = array<i32>} : memref<72x384xbf16, #tpu.memory_space<vmem>>, vector<8x24xbf16>,
    %c40 = arith.constant 40 : index
    %c0_23 = arith.constant 0 : index
    %18 = vector.load %arg6[%c40, %c0_23] : memref<128x24xbf16, #tpu.memory_space<vmem>>, vector<8x24xbf16>
    %c0_24 = arith.constant 0 : index
    %c120 = arith.constant 120 : index
    %19 = vector.load %arg7[%c0_24, %c120] : memref<72x384xbf16, #tpu.memory_space<vmem>>, vector<8x24xbf16>
    tpu.vector_store %arg7[%c0_24, %c120], %18 {strides = array<i32>} : memref<72x384xbf16, #tpu.memory_space<vmem>>, vector<8x24xbf16>,
    %c48_25 = arith.constant 48 : index
    %c0_26 = arith.constant 0 : index
    %20 = vector.load %arg6[%c48_25, %c0_26] : memref<128x24xbf16, #tpu.memory_space<vmem>>, vector<8x24xbf16>
    %c0_27 = arith.constant 0 : index
    %c144 = arith.constant 144 : index
    %21 = vector.load %arg7[%c0_27, %c144] : memref<72x384xbf16, #tpu.memory_space<vmem>>, vector<8x24xbf16>
    tpu.vector_store %arg7[%c0_27, %c144], %20 {strides = array<i32>} : memref<72x384xbf16, #tpu.memory_space<vmem>>, vector<8x24xbf16>,
    %c56 = arith.constant 56 : index
    %c0_28 = arith.constant 0 : index
    %22 = vector.load %arg6[%c56, %c0_28] : memref<128x24xbf16, #tpu.memory_space<vmem>>, vector<8x24xbf16>
    %c0_29 = arith.constant 0 : index
    %c168 = arith.constant 168 : index
    %23 = vector.load %arg7[%c0_29, %c168] : memref<72x384xbf16, #tpu.memory_space<vmem>>, vector<8x24xbf16>
    tpu.vector_store %arg7[%c0_29, %c168], %22 {strides = array<i32>} : memref<72x384xbf16, #tpu.memory_space<vmem>>, vector<8x24xbf16>,
    %c64 = arith.constant 64 : index
    %c0_30 = arith.constant 0 : index
    %24 = vector.load %arg6[%c64, %c0_30] : memref<128x24xbf16, #tpu.memory_space<vmem>>, vector<8x24xbf16>
    %c0_31 = arith.constant 0 : index
    %c192 = arith.constant 192 : index
    %25 = vector.load %arg7[%c0_31, %c192] : memref<72x384xbf16, #tpu.memory_space<vmem>>, vector<8x24xbf16>
    tpu.vector_store %arg7[%c0_31, %c192], %24 {strides = array<i32>} : memref<72x384xbf16, #tpu.memory_space<vmem>>, vector<8x24xbf16>,
    %c72_32 = arith.constant 72 : index
    %c0_33 = arith.constant 0 : index
    %26 = vector.load %arg6[%c72_32, %c0_33] : memref<128x24xbf16, #tpu.memory_space<vmem>>, vector<8x24xbf16>
    %c0_34 = arith.constant 0 : index
    %c216 = arith.constant 216 : index
    %27 = vector.load %arg7[%c0_34, %c216] : memref<72x384xbf16, #tpu.memory_space<vmem>>, vector<8x24xbf16>
    tpu.vector_store %arg7[%c0_34, %c216], %26 {strides = array<i32>} : memref<72x384xbf16, #tpu.memory_space<vmem>>, vector<8x24xbf16>,
    %c80 = arith.constant 80 : index
    %c0_35 = arith.constant 0 : index
    %28 = vector.load %arg6[%c80, %c0_35] : memref<128x24xbf16, #tpu.memory_space<vmem>>, vector<8x24xbf16>
    %c0_36 = arith.constant 0 : index
    %c240 = arith.constant 240 : index
    %29 = vector.load %arg7[%c0_36, %c240] : memref<72x384xbf16, #tpu.memory_space<vmem>>, vector<8x24xbf16>
    tpu.vector_store %arg7[%c0_36, %c240], %28 {strides = array<i32>} : memref<72x384xbf16, #tpu.memory_space<vmem>>, vector<8x24xbf16>,
    %c88 = arith.constant 88 : index
    %c0_37 = arith.constant 0 : index
    %30 = vector.load %arg6[%c88, %c0_37] : memref<128x24xbf16, #tpu.memory_space<vmem>>, vector<8x24xbf16>
    %c0_38 = arith.constant 0 : index
    %c264 = arith.constant 264 : index
    %31 = vector.load %arg7[%c0_38, %c264] : memref<72x384xbf16, #tpu.memory_space<vmem>>, vector<8x24xbf16>
    tpu.vector_store %arg7[%c0_38, %c264], %30 {strides = array<i32>} : memref<72x384xbf16, #tpu.memory_space<vmem>>, vector<8x24xbf16>,
    %c96_39 = arith.constant 96 : index
    %c0_40 = arith.constant 0 : index
    %32 = vector.load %arg6[%c96_39, %c0_40] : memref<128x24xbf16, #tpu.memory_space<vmem>>, vector<8x24xbf16>
    %c0_41 = arith.constant 0 : index
    %c288 = arith.constant 288 : index
    %33 = vector.load %arg7[%c0_41, %c288] : memref<72x384xbf16, #tpu.memory_space<vmem>>, vector<8x24xbf16>
    tpu.vector_store %arg7[%c0_41, %c288], %32 {strides = array<i32>} : memref<72x384xbf16, #tpu.memory_space<vmem>>, vector<8x24xbf16>,
    %c104 = arith.constant 104 : index
    %c0_42 = arith.constant 0 : index
    %34 = vector.load %arg6[%c104, %c0_42] : memref<128x24xbf16, #tpu.memory_space<vmem>>, vector<8x24xbf16>
    %c0_43 = arith.constant 0 : index
    %c312 = arith.constant 312 : index
    %35 = vector.load %arg7[%c0_43, %c312] : memref<72x384xbf16, #tpu.memory_space<vmem>>, vector<8x24xbf16>
    tpu.vector_store %arg7[%c0_43, %c312], %34 {strides = array<i32>} : memref<72x384xbf16, #tpu.memory_space<vmem>>, vector<8x24xbf16>,
    %c112 = arith.constant 112 : index
    %c0_44 = arith.constant 0 : index
    %36 = vector.load %arg6[%c112, %c0_44] : memref<128x24xbf16, #tpu.memory_space<vmem>>, vector<8x24xbf16>
    %c0_45 = arith.constant 0 : index
    %c336 = arith.constant 336 : index
    %37 = vector.load %arg7[%c0_45, %c336] : memref<72x384xbf16, #tpu.memory_space<vmem>>, vector<8x24xbf16>
    tpu.vector_store %arg7[%c0_45, %c336], %36 {strides = array<i32>} : memref<72x384xbf16, #tpu.memory_space<vmem>>, vector<8x24xbf16>,
    %c120_46 = arith.constant 120 : index
    %c0_47 = arith.constant 0 : index
    %38 = vector.load %arg6[%c120_46, %c0_47] : memref<128x24xbf16, #tpu.memory_space<vmem>>, vector<8x24xbf16>
    %c0_48 = arith.constant 0 : index
    %c360 = arith.constant 360 : index
    %39 = vector.load %arg7[%c0_48, %c360] : memref<72x384xbf16, #tpu.memory_space<vmem>>, vector<8x24xbf16>
    tpu.vector_store %arg7[%c0_48, %c360], %38 {strides = array<i32>} : memref<72x384xbf16, #tpu.memory_space<vmem>>, vector<8x24xbf16>,
    %c0_49 = arith.constant 0 : index
    %c0_50 = arith.constant 0 : index
    %40 = vector.load %arg7[%c0_49, %c0_50] : memref<72x384xbf16, #tpu.memory_space<vmem>>, vector<8x384xbf16>
    %41 = vector.extract_strided_slice %40 {offsets = [0, 1], sizes = [8, 383], strides = [1, 1]} : vector<8x384xbf16> to vector<8x383xbf16>
    %c8_51 = arith.constant 8 : index
    %c0_52 = arith.constant 0 : index
    %42 = vector.load %arg7[%c8_51, %c0_52] : memref<72x384xbf16, #tpu.memory_space<vmem>>, vector<8x383xbf16>
    tpu.vector_store %arg7[%c8_51, %c0_52], %41 {strides = array<i32>} : memref<72x384xbf16, #tpu.memory_space<vmem>>, vector<8x383xbf16>,
    %cst_53 = arith.constant 0.000000e+00 : bf16
    %43 = vector.broadcast %cst_53 : bf16 to vector<8x1xbf16>
    %c8_54 = arith.constant 8 : index
    %c383 = arith.constant 383 : index
    %44 = vector.load %arg7[%c8_54, %c383] : memref<72x384xbf16, #tpu.memory_space<vmem>>, vector<8x1xbf16>
    tpu.vector_store %arg7[%c8_54, %c383], %43 {strides = array<i32>} : memref<72x384xbf16, #tpu.memory_space<vmem>>, vector<8x1xbf16>,
    %45 = vector.extract_strided_slice %40 {offsets = [0, 2], sizes = [8, 382], strides = [1, 1]} : vector<8x384xbf16> to vector<8x382xbf16>
    %c16_55 = arith.constant 16 : index
    %c0_56 = arith.constant 0 : index
    %46 = vector.load %arg7[%c16_55, %c0_56] : memref<72x384xbf16, #tpu.memory_space<vmem>>, vector<8x382xbf16>
    tpu.vector_store %arg7[%c16_55, %c0_56], %45 {strides = array<i32>} : memref<72x384xbf16, #tpu.memory_space<vmem>>, vector<8x382xbf16>,
    %cst_57 = arith.constant 0.000000e+00 : bf16
    %47 = vector.broadcast %cst_57 : bf16 to vector<8x2xbf16>
    %c16_58 = arith.constant 16 : index
    %c382 = arith.constant 382 : index
    %48 = vector.load %arg7[%c16_58, %c382] : memref<72x384xbf16, #tpu.memory_space<vmem>>, vector<8x2xbf16>
    tpu.vector_store %arg7[%c16_58, %c382], %47 {strides = array<i32>} : memref<72x384xbf16, #tpu.memory_space<vmem>>, vector<8x2xbf16>,
    %49 = vector.extract_strided_slice %40 {offsets = [0, 3], sizes = [8, 381], strides = [1, 1]} : vector<8x384xbf16> to vector<8x381xbf16>
    %c24_59 = arith.constant 24 : index
    %c0_60 = arith.constant 0 : index
    %50 = vector.load %arg7[%c24_59, %c0_60] : memref<72x384xbf16, #tpu.memory_space<vmem>>, vector<8x381xbf16>
    tpu.vector_store %arg7[%c24_59, %c0_60], %49 {strides = array<i32>} : memref<72x384xbf16, #tpu.memory_space<vmem>>, vector<8x381xbf16>,
    %cst_61 = arith.constant 0.000000e+00 : bf16
    %51 = vector.broadcast %cst_61 : bf16 to vector<8x3xbf16>
    %c24_62 = arith.constant 24 : index
    %c381 = arith.constant 381 : index
    %52 = vector.load %arg7[%c24_62, %c381] : memref<72x384xbf16, #tpu.memory_space<vmem>>, vector<8x3xbf16>
    tpu.vector_store %arg7[%c24_62, %c381], %51 {strides = array<i32>} : memref<72x384xbf16, #tpu.memory_space<vmem>>, vector<8x3xbf16>,
    %53 = vector.extract_strided_slice %40 {offsets = [0, 4], sizes = [8, 380], strides = [1, 1]} : vector<8x384xbf16> to vector<8x380xbf16>
    %c32_63 = arith.constant 32 : index
    %c0_64 = arith.constant 0 : index
    %54 = vector.load %arg7[%c32_63, %c0_64] : memref<72x384xbf16, #tpu.memory_space<vmem>>, vector<8x380xbf16>
    tpu.vector_store %arg7[%c32_63, %c0_64], %53 {strides = array<i32>} : memref<72x384xbf16, #tpu.memory_space<vmem>>, vector<8x380xbf16>,
    %cst_65 = arith.constant 0.000000e+00 : bf16
    %55 = vector.broadcast %cst_65 : bf16 to vector<8x4xbf16>
    %c32_66 = arith.constant 32 : index
    %c380 = arith.constant 380 : index
    %56 = vector.load %arg7[%c32_66, %c380] : memref<72x384xbf16, #tpu.memory_space<vmem>>, vector<8x4xbf16>
    tpu.vector_store %arg7[%c32_66, %c380], %55 {strides = array<i32>} : memref<72x384xbf16, #tpu.memory_space<vmem>>, vector<8x4xbf16>,
    %57 = vector.extract_strided_slice %40 {offsets = [0, 5], sizes = [8, 379], strides = [1, 1]} : vector<8x384xbf16> to vector<8x379xbf16>
    %c40_67 = arith.constant 40 : index
    %c0_68 = arith.constant 0 : index
    %58 = vector.load %arg7[%c40_67, %c0_68] : memref<72x384xbf16, #tpu.memory_space<vmem>>, vector<8x379xbf16>
    tpu.vector_store %arg7[%c40_67, %c0_68], %57 {strides = array<i32>} : memref<72x384xbf16, #tpu.memory_space<vmem>>, vector<8x379xbf16>,
    %cst_69 = arith.constant 0.000000e+00 : bf16
    %59 = vector.broadcast %cst_69 : bf16 to vector<8x5xbf16>
    %c40_70 = arith.constant 40 : index
    %c379 = arith.constant 379 : index
    %60 = vector.load %arg7[%c40_70, %c379] : memref<72x384xbf16, #tpu.memory_space<vmem>>, vector<8x5xbf16>
    tpu.vector_store %arg7[%c40_70, %c379], %59 {strides = array<i32>} : memref<72x384xbf16, #tpu.memory_space<vmem>>, vector<8x5xbf16>,
    %61 = vector.extract_strided_slice %40 {offsets = [0, 6], sizes = [8, 378], strides = [1, 1]} : vector<8x384xbf16> to vector<8x378xbf16>
    %c48_71 = arith.constant 48 : index
    %c0_72 = arith.constant 0 : index
    %62 = vector.load %arg7[%c48_71, %c0_72] : memref<72x384xbf16, #tpu.memory_space<vmem>>, vector<8x378xbf16>
    tpu.vector_store %arg7[%c48_71, %c0_72], %61 {strides = array<i32>} : memref<72x384xbf16, #tpu.memory_space<vmem>>, vector<8x378xbf16>,
    %cst_73 = arith.constant 0.000000e+00 : bf16
    %63 = vector.broadcast %cst_73 : bf16 to vector<8x6xbf16>
    %c48_74 = arith.constant 48 : index
    %c378 = arith.constant 378 : index
    %64 = vector.load %arg7[%c48_74, %c378] : memref<72x384xbf16, #tpu.memory_space<vmem>>, vector<8x6xbf16>
    tpu.vector_store %arg7[%c48_74, %c378], %63 {strides = array<i32>} : memref<72x384xbf16, #tpu.memory_space<vmem>>, vector<8x6xbf16>,
    %65 = vector.extract_strided_slice %40 {offsets = [0, 7], sizes = [8, 377], strides = [1, 1]} : vector<8x384xbf16> to vector<8x377xbf16>
    %c56_75 = arith.constant 56 : index
    %c0_76 = arith.constant 0 : index
    %66 = vector.load %arg7[%c56_75, %c0_76] : memref<72x384xbf16, #tpu.memory_space<vmem>>, vector<8x377xbf16>
    tpu.vector_store %arg7[%c56_75, %c0_76], %65 {strides = array<i32>} : memref<72x384xbf16, #tpu.memory_space<vmem>>, vector<8x377xbf16>,
    %cst_77 = arith.constant 0.000000e+00 : bf16
    %67 = vector.broadcast %cst_77 : bf16 to vector<8x7xbf16>
    %c56_78 = arith.constant 56 : index
    %c377 = arith.constant 377 : index
    %68 = vector.load %arg7[%c56_78, %c377] : memref<72x384xbf16, #tpu.memory_space<vmem>>, vector<8x7xbf16>
    tpu.vector_store %arg7[%c56_78, %c377], %67 {strides = array<i32>} : memref<72x384xbf16, #tpu.memory_space<vmem>>, vector<8x7xbf16>,
    %69 = vector.extract_strided_slice %40 {offsets = [0, 8], sizes = [8, 376], strides = [1, 1]} : vector<8x384xbf16> to vector<8x376xbf16>
    %c64_79 = arith.constant 64 : index
    %c0_80 = arith.constant 0 : index
    %70 = vector.load %arg7[%c64_79, %c0_80] : memref<72x384xbf16, #tpu.memory_space<vmem>>, vector<8x376xbf16>
    tpu.vector_store %arg7[%c64_79, %c0_80], %69 {strides = array<i32>} : memref<72x384xbf16, #tpu.memory_space<vmem>>, vector<8x376xbf16>,
    %cst_81 = arith.constant 0.000000e+00 : bf16
    %71 = vector.broadcast %cst_81 : bf16 to vector<8x8xbf16>
    %c64_82 = arith.constant 64 : index
    %c376 = arith.constant 376 : index
    %72 = vector.load %arg7[%c64_82, %c376] : memref<72x384xbf16, #tpu.memory_space<vmem>>, vector<8x8xbf16>
    tpu.vector_store %arg7[%c64_82, %c376], %71 {strides = array<i32>} : memref<72x384xbf16, #tpu.memory_space<vmem>>, vector<8x8xbf16>,
    %c0_83 = arith.constant 0 : index
    %c0_84 = arith.constant 0 : index
    %73 = vector.load %arg7[%c0_83, %c0_84] : memref<72x384xbf16, #tpu.memory_space<vmem>>, vector<72x384xbf16>
    %cst_85 = arith.constant dense<0.000000e+00> : vector<8x384xf32>
    %74 = tpu.matmul %6, %73, %cst_85 {dimension_numbers = #tpu.dot_dimension_numbers<[1], [0], [0], [1], [0, 0, 1, 1], [], []>} : vector<8x72xbf16>, vector<72x384xbf16>, vector<8x384xf32> -> vector<8x384xf32>
    %75 = arith.addf %74, %7 : vector<8x384xf32>
    %76 = arith.truncf %75 : vector<8x384xf32> to vector<8x384xbf16>
    %c0_86 = arith.constant 0 : index
    %c0_87 = arith.constant 0 : index
    %c0_88 = arith.constant 0 : index
    %77 = vector.load %arg5[%c0_86, %c0_87, %c0_88] : memref<1x8x384xbf16, #tpu.memory_space<vmem>>, vector<1x8x384xbf16>
    %78 = vector.shape_cast %77 : vector<1x8x384xbf16> to vector<8x384xbf16>
    %79 = vector.shape_cast %76 : vector<8x384xbf16> to vector<1x8x384xbf16>
    tpu.vector_store %arg5[%c0_86, %c0_87, %c0_88], %79 {strides = array<i32>} : memref<1x8x384xbf16, #tpu.memory_space<vmem>>, vector<1x8x384xbf16>,
    return
  }
  func.func @transform_0(%arg0: i32) -> (i32, i32, i32) {
    %c0_i32 = arith.constant 0 : i32
    %c0_i32_0 = arith.constant 0 : i32
    %c0_i32_1 = arith.constant 0 : i32
    return %arg0, %c0_i32, %c0_i32_0 : i32, i32, i32
  }
  func.func @transform_1(%arg0: i32) -> (i32, i32) {
    %c0_i32 = arith.constant 0 : i32
    %c0_i32_0 = arith.constant 0 : i32
    %c0_i32_1 = arith.constant 0 : i32
    return %c0_i32, %c0_i32_0 : i32, i32
  }
  func.func @transform_2(%arg0: i32) -> (i32, i32) {
    %c0_i32 = arith.constant 0 : i32
    %c0_i32_0 = arith.constant 0 : i32
    %c0_i32_1 = arith.constant 0 : i32
    return %c0_i32, %c0_i32_0 : i32, i32
  }
  func.func @transform_3(%arg0: i32) -> (i32, i32) {
    %c0_i32 = arith.constant 0 : i32
    %c0_i32_0 = arith.constant 0 : i32
    %c0_i32_1 = arith.constant 0 : i32
    return %c0_i32, %c0_i32_0 : i32, i32
  }
  func.func @transform_4(%arg0: i32) -> (i32, i32, i32) {
    %c0_i32 = arith.constant 0 : i32
    %c0_i32_0 = arith.constant 0 : i32
    %c0_i32_1 = arith.constant 0 : i32
    return %arg0, %c0_i32, %c0_i32_0 : i32, i32, i32
  }
}

</mosaic_0001>

<llo_original>
// kernel: tpu_custom_call.1
$region0: #{tpu_custom_call.1}
  #allocation0 [shape = 'u32[]', space=smem, size = 0x4, offset = 0x4, fixed_abs, tag = 'smem constant byte address 0x4 - core index']
  #allocation1 [shape = 'u32[144,128]{1,0:T(1,128)}', space=vmem, size = 0x12000, scoped, tag = 'internal scratch']
  #allocation2 [shape = 'bf16[128,24]{1,0:T(8,128)(2,1)}', space=vmem, size = 0x8000, scoped, tag = 'scratch operand']
  #allocation3 [shape = 'bf16[72,384]{1,0:T(8,128)(2,1)}', space=vmem, size = 0xd800, scoped, tag = 'scratch operand']
  %s0 = inlined_call_operand.vmem [shape: bf16[2,64,24], index: 0, kind: input, shape index: {}]
  %s1 = inlined_call_operand.vmem [shape: bf16[128,64], index: 1, kind: input, shape index: {}]
  %s2 = inlined_call_operand.vmem [shape: bf16[8,72], index: 2, kind: input, shape index: {}]
  %s3 = inlined_call_operand.vmem [shape: f32[8,384], index: 3, kind: input, shape index: {}]
  %s4 = inlined_call_operand.hbm [shape: bf16[2,8,384], index: 4, kind: output, shape index: {}]
  %s5 = sld [smem:[#allocation0]]
  $region49: #{tpu_custom_call.1} parent=0
    _
  %s7 = ssub.s32 1, %s5
  %s8 = scalar_select 0, %s7, %s5
  $region1: #{tpu_custom_call.1} parent=0
    #allocation4 [shape = 'u8[12288]{0}', space=vmem, size = 0x3000, scoped, tag = 'output window, operand 0']
    #allocation5 [shape = 's32[2]{0}', space=sflag, size = 0x8, scoped, tag = 'scoped memory for tpu_custom_call.1']
    %9 = vsyncpa [#allocation5], 0
    %s10 = scalar_lea.sflag [#allocation5], 1
    %11 = vsyncpa %s10, 0
    loop: start=0, step=1, limit=4
    $region2: #{tpu_custom_call.1} parent=1 // loop_pre_header
      _
    $region3: #{tpu_custom_call.1} parent=1 // loop_header
      %s13 = sphi 0, %s17
      %p14 = scmp.ge.s32.totalorder %s13, 4
      %s23 = sphi 0, %s25
      %s26 = sphi 0, %s23
      %s27 = sphi 0, %s26
      %s43 = sphi 0, %s27
      %s47 = sphi 0, %s47
      %s49 = sphi 0, %s47
      %s50 = sphi 0, %s49
      %s64 = sphi 0, %s50
      %s68 = sphi 0, %s68
      %s70 = sphi 0, %s68
      %s71 = sphi 0, %s70
      %s85 = sphi 0, %s71
      %s89 = sphi 0, %s89
      %s91 = sphi 0, %s89
      %s92 = sphi 0, %s91
      %s106 = sphi 0, %s92
      %s112 = sphi 0, %s114
      %s115 = sphi 0, %s112
      %s116 = sphi 0, %s115
      %s132 = sphi 0, %s116
    $region4: #{tpu_custom_call.1} parent=1 // loop_header_branch
      %16 = sbr.rel (%p14) target = $region8
    $region5: #{tpu_custom_call.1} parent=1 // loop_body
      %s18 = ssub.s32 %s13, 1
      %s19 = ssub.s32 %s13, 2
      %s20 = sadd.s32 %s13, 1
      %s21 = ssub.s32 %s13, %s20
      %p22 = scmp.eq.s32.totalorder %s21, 0
      %s24 = sadd.s32 %s23, 1
      %s25 = scalar_select %p22, %s23, %s24
      %p28 = pneg %p22
      %p29 = scmp.eq.s32.totalorder %s13, 1
      %p30 = por %p28, %p29
      %p31 = scmp.ne.s32.totalorder %s23, %s26
      %p32 = scmp.eq.s32.totalorder %s13, 0
      %p33 = por %p31, %p32
      %p34 = scmp.ne.s32.totalorder %s23, %s26
      %p35 = scmp.eq.s32.totalorder %s18, 1
      %p36 = por %p34, %p35
      %p37 = scmp.ne.s32.totalorder %s26, %s27
      %p38 = scmp.eq.s32.totalorder %s18, 0
      %p39 = por %p37, %p38
      %p40 = scmp.ne.s32.totalorder %s26, %s27
      %p41 = scmp.eq.s32.totalorder %s19, 1
      %p42 = por %p40, %p41
      %p44 = scmp.ne.s32.totalorder %s27, %s43
      %p45 = scmp.eq.s32.totalorder %s19, 0
      %p46 = por %p44, %p45
      %s48 = sadd.s32 %s47, 1
      %p51 = scmp.eq.s32.totalorder %s13, 1
      %p52 = scmp.ne.s32.totalorder %s47, %s49
      %p53 = scmp.eq.s32.totalorder %s13, 0
      %p54 = por %p52, %p53
      %p55 = scmp.ne.s32.totalorder %s47, %s49
      %p56 = scmp.eq.s32.totalorder %s18, 1
      %p57 = por %p55, %p56
      %p58 = scmp.ne.s32.totalorder %s49, %s50
      %p59 = scmp.eq.s32.totalorder %s18, 0
      %p60 = por %p58, %p59
      %p61 = scmp.ne.s32.totalorder %s49, %s50
      %p62 = scmp.eq.s32.totalorder %s19, 1
      %p63 = por %p61, %p62
      %p65 = scmp.ne.s32.totalorder %s50, %s64
      %p66 = scmp.eq.s32.totalorder %s19, 0
      %p67 = por %p65, %p66
      %s69 = sadd.s32 %s68, 1
      %p72 = scmp.eq.s32.totalorder %s13, 1
      %p73 = scmp.ne.s32.totalorder %s68, %s70
      %p74 = scmp.eq.s32.totalorder %s13, 0
      %p75 = por %p73, %p74
      %p76 = scmp.ne.s32.totalorder %s68, %s70
      %p77 = scmp.eq.s32.totalorder %s18, 1
      %p78 = por %p76, %p77
      %p79 = scmp.ne.s32.totalorder %s70, %s71
      %p80 = scmp.eq.s32.totalorder %s18, 0
      %p81 = por %p79, %p80
      %p82 = scmp.ne.s32.totalorder %s70, %s71
      %p83 = scmp.eq.s32.totalorder %s19, 1
      %p84 = por %p82, %p83
      %p86 = scmp.ne.s32.totalorder %s71, %s85
      %p87 = scmp.eq.s32.totalorder %s19, 0
      %p88 = por %p86, %p87
      %s90 = sadd.s32 %s89, 1
      %p93 = scmp.eq.s32.totalorder %s13, 1
      %p94 = scmp.ne.s32.totalorder %s89, %s91
      %p95 = scmp.eq.s32.totalorder %s13, 0
      %p96 = por %p94, %p95
      %p97 = scmp.ne.s32.totalorder %s89, %s91
      %p98 = scmp.eq.s32.totalorder %s18, 1
      %p99 = por %p97, %p98
      %p100 = scmp.ne.s32.totalorder %s91, %s92
      %p101 = scmp.eq.s32.totalorder %s18, 0
      %p102 = por %p100, %p101
      %p103 = scmp.ne.s32.totalorder %s91, %s92
      %p104 = scmp.eq.s32.totalorder %s19, 1
      %p105 = por %p103, %p104
      %p107 = scmp.ne.s32.totalorder %s92, %s106
      %p108 = scmp.eq.s32.totalorder %s19, 0
      %p109 = por %p107, %p108
      %s110 = ssub.s32 %s13, %s20
      %p111 = scmp.eq.s32.totalorder %s110, 0
      %s113 = sadd.s32 %s112, 1
      %s114 = scalar_select %p111, %s112, %s113
      %p117 = pneg %p111
      %p118 = scmp.eq.s32.totalorder %s13, 1
      %p119 = por %p117, %p118
      %p120 = scmp.ne.s32.totalorder %s112, %s115
      %p121 = scmp.eq.s32.totalorder %s13, 0
      %p122 = por %p120, %p121
      %p123 = scmp.ne.s32.totalorder %s112, %s115
      %p124 = scmp.eq.s32.totalorder %s18, 1
      %p125 = por %p123, %p124
      %p126 = scmp.ne.s32.totalorder %s115, %s116
      %p127 = scmp.eq.s32.totalorder %s18, 0
      %p128 = por %p126, %p127
      %p129 = scmp.ne.s32.totalorder %s115, %s116
      %p130 = scmp.eq.s32.totalorder %s19, 1
      %p131 = por %p129, %p130
      %p133 = scmp.ne.s32.totalorder %s116, %s132
      %p134 = scmp.eq.s32.totalorder %s19, 0
      %p135 = por %p133, %p134
      %p136 = scmp.le.s32.totalorder 1, %s13
      %p137 = scmp.lt.s32.totalorder %s13, 3
      %p138 = pnand %p136, %p137
      %p139 = pneg %p138
      // Predicated region
      $region9: #{tpu_custom_call.1} parent=5 // pred_check
        _
      $region10: #{tpu_custom_call.1} parent=5 // pred_check_branch
        %141 = sbr.rel (%p138) target = $region12
      $region11: #{tpu_custom_call.1} parent=5 // pred_region
        %s142 = ssub.s32 %s13, 1
        // Predicated region
        $region13: #{tpu_custom_call.1} parent=11 // pred_check
          %p143 = pneg %p60
        $region14: #{tpu_custom_call.1} parent=11 // pred_check_branch
          %145 = sbr.rel (%p143) target = $region16
        $region15: #{tpu_custom_call.1} parent=11 // pred_region
          _
        $region16: #{tpu_custom_call.1} parent=11 // pred_fallthru
          _
        // Predicated region
        $region17: #{tpu_custom_call.1} parent=11 // pred_check
          %p146 = pneg %p81
        $region18: #{tpu_custom_call.1} parent=11 // pred_check_branch
          %148 = sbr.rel (%p146) target = $region20
        $region19: #{tpu_custom_call.1} parent=11 // pred_region
          _
        $region20: #{tpu_custom_call.1} parent=11 // pred_fallthru
          _
        // Predicated region
        $region21: #{tpu_custom_call.1} parent=11 // pred_check
          %p149 = pneg %p102
        $region22: #{tpu_custom_call.1} parent=11 // pred_check_branch
          %151 = sbr.rel (%p149) target = $region24
        $region23: #{tpu_custom_call.1} parent=11 // pred_region
          _
        $region24: #{tpu_custom_call.1} parent=11 // pred_fallthru
          _
      $region12: #{tpu_custom_call.1} parent=5 // pred_fallthru
        _
      %p152 = scmp.lt.s32.totalorder %s13, 2
      // Predicated region
      $region25: #{tpu_custom_call.1} parent=5 // pred_check
        %p153 = pneg %p152
      $region26: #{tpu_custom_call.1} parent=5 // pred_check_branch
        %155 = sbr.rel (%p153) target = $region28
      $region27: #{tpu_custom_call.1} parent=5 // pred_region
        // Predicated region
        $region29: #{tpu_custom_call.1} parent=27 // pred_check
          %p156 = pneg %p33
        $region30: #{tpu_custom_call.1} parent=27 // pred_check_branch
          %158 = sbr.rel (%p156) target = $region32
        $region31: #{tpu_custom_call.1} parent=27 // pred_region
          %p159 = scmp.lt.s32.totalorder %s13, 1
          %s160 = scalar_select %p159, %s13, 1
          %s161 = smul.addr %s160, 8
          %s162 = smul.addr %s161, 4
          %s163 = scalar_lea.vmem %s0, %s162
        $region32: #{tpu_custom_call.1} parent=27 // pred_fallthru
          _
      $region28: #{tpu_custom_call.1} parent=5 // pred_fallthru
        _
      %p164 = scmp.le.s32.totalorder 1, %s13
      %p165 = scmp.lt.s32.totalorder %s13, 3
      %p166 = pnand %p164, %p165
      %p167 = pneg %p166
      // Predicated region
      $region33: #{tpu_custom_call.1} parent=5 // pred_check
        _
      $region34: #{tpu_custom_call.1} parent=5 // pred_check_branch
        %169 = sbr.rel (%p166) target = $region36
      $region35: #{tpu_custom_call.1} parent=5 // pred_region
        %s170 = ssub.s32 %s13, 1
        %p171 = scmp.lt.s32.totalorder %s18, 1
        %s172 = scalar_select %p171, %s18, 1
        %s173 = smul.addr %s172, 8
        %s174 = smul.addr %s173, 4
        %s175 = scalar_lea.vmem %s0, %s174
        %p176 = pneg %p39
        %p177 = pneg %p36
        %p178 = pneg %p60
        %p179 = pneg %p57
        %p180 = pneg %p81
        %p181 = pneg %p78
        %p182 = pneg %p102
        %p183 = pneg %p99
        %p184 = pneg %p128
        %p185 = pneg %p125
        %s186 = sand.u32 %s115, 1
        %s187 = scalar_lea.sflag [#allocation5], %s186
        %s188 = sand.u32 %s115, 1
        %s189 = smul.addr %s188, 12
        %s190 = scalar_lea.vmem [#allocation4], %s189
        %p191 = scmp.lt.s32.totalorder %s18, 1
        %s192 = scalar_select %p191, %s18, 1
        %s193 = smul.addr %s192, 8
        %s194 = smul.addr %s193, 4
        %s195 = scalar_lea.vmem %s0, %s194
        %v197 = vld [vmem:[%s1] sm:$0xf]
        %v198 = vld [vmem:[%s1 + $0x4] sm:$0xf]
        %v199 = vld [vmem:[%s1 + $0x8] sm:$0xf]
        %v200 = vld [vmem:[%s1 + $0xc] sm:$0xf]
        %v201 = vld [vmem:[%s1 + $0x10] sm:$0xf]
        %v202 = vld [vmem:[%s1 + $0x14] sm:$0xf]
        %v203 = vld [vmem:[%s1 + $0x18] sm:$0xf]
        %v204 = vld [vmem:[%s1 + $0x1c] sm:$0xf]
        %v205 = vld [vmem:[%s1 + $0x20] sm:$0xf]
        %v206 = vld [vmem:[%s1 + $0x24] sm:$0xf]
        %v207 = vld [vmem:[%s1 + $0x28] sm:$0xf]
        %v208 = vld [vmem:[%s1 + $0x2c] sm:$0xf]
        %v209 = vld [vmem:[%s1 + $0x30] sm:$0xf]
        %v210 = vld [vmem:[%s1 + $0x34] sm:$0xf]
        %v211 = vld [vmem:[%s1 + $0x38] sm:$0xf]
        %v212 = vld [vmem:[%s1 + $0x3c] sm:$0xf]
        %v213 = vld [vmem:[%s195] sm:$0xf]
        %v214 = vld [vmem:[%s195 + $0x4] sm:$0xf]
        %v215 = vld [vmem:[%s195 + $0x8] sm:$0xf]
        %v216 = vld [vmem:[%s195 + $0xc] sm:$0xf]
        %v217 = vld [vmem:[%s195 + $0x10] sm:$0xf]
        %v218 = vld [vmem:[%s195 + $0x14] sm:$0xf]
        %v219 = vld [vmem:[%s195 + $0x18] sm:$0xf]
        %v220 = vld [vmem:[%s195 + $0x1c] sm:$0xf]
        %v237 = vunpack.c.l.b16 %v197
        %v238 = vunpack.c.l.b16 %v198
        %v239 = vunpack.c.l.b16 %v199
        %v240 = vunpack.c.l.b16 %v200
        %v241 = vunpack.c.l.b16 %v201
        %v242 = vunpack.c.l.b16 %v202
        %v243 = vunpack.c.l.b16 %v203
        %v244 = vunpack.c.l.b16 %v204
        %v245 = vunpack.c.l.b16 %v205
        %v246 = vunpack.c.l.b16 %v206
        %v247 = vunpack.c.l.b16 %v207
        %v248 = vunpack.c.l.b16 %v208
        %v249 = vunpack.c.l.b16 %v209
        %v250 = vunpack.c.l.b16 %v210
        %v251 = vunpack.c.l.b16 %v211
        %v252 = vunpack.c.l.b16 %v212
        %v253 = vpack.c.b16 %v238, %v237
        %v254 = vpack.c.b16 %v240, %v239
        %v255 = vpack.c.b16 %v242, %v241
        %v256 = vpack.c.b16 %v244, %v243
        %v257 = vpack.c.b16 %v246, %v245
        %v258 = vpack.c.b16 %v248, %v247
        %v259 = vpack.c.b16 %v250, %v249
        %v260 = vpack.c.b16 %v252, %v251
        %v269 = vunpack.c.l.b16 %v213
        %v270 = vunpack.c.l.b16 %v214
        %v271 = vunpack.c.l.b16 %v215
        %v272 = vunpack.c.l.b16 %v216
        %v273 = vunpack.c.l.b16 %v217
        %v274 = vunpack.c.l.b16 %v218
        %v275 = vunpack.c.l.b16 %v219
        %v276 = vunpack.c.l.b16 %v220
        %v277 = vpack.c.b16 %v270, %v269
        %v278 = vpack.c.b16 %v272, %v271
        %v279 = vpack.c.b16 %v274, %v273
        %v280 = vpack.c.b16 %v276, %v275
        %vm285 = vcmask 523264
        %v287 = vsel %vm285, %v253, 0
        %v290 = vsel %vm285, %v254, 0
        %v293 = vsel %vm285, %v255, 0
        %v296 = vsel %vm285, %v256, 0
        %v299 = vsel %vm285, %v257, 0
        %v302 = vsel %vm285, %v258, 0
        %v305 = vsel %vm285, %v259, 0
        %v308 = vsel %vm285, %v260, 0
        %310 = vmatprep.subr.bf16.mxu0 0
        %311 = vmatpush1.bf16.msra.mxu0 0
        %312 = vmatprep.subr.bf16.mxu0 0
        %313 = vmatpush1.bf16.msra.mxu0 0
        %314 = vmatprep.subr.bf16.mxu0 0
        %315 = vmatpush1.bf16.msra.mxu0 0
        %316 = vmatprep.subr.bf16.mxu0 0
        %317 = vmatpush1.bf16.msra.mxu0 0
        %318 = vmatprep.subr.bf16.mxu0 0
        %319 = vmatpush1.bf16.msra.mxu0 %v280
        %320 = vmatprep.subr.bf16.mxu0 0
        %321 = vmatpush1.bf16.msra.mxu0 %v279
        %322 = vmatprep.subr.bf16.mxu0 0
        %323 = vmatpush1.bf16.msra.mxu0 %v278
        %324 = vmatprep.subr.bf16.mxu0 0
        %325 = vmatpush1.bf16.msra.mxu0 %v277
        %326 = vmatprep.subr.bf16.mxu0 0
        %327 = vmatpush2.bf16.msra.mxu0 0
        %328 = vmatprep.subr.bf16.mxu0 0
        %329 = vmatpush2.bf16.msra.mxu0 0
        %330 = vmatprep.subr.bf16.mxu0 0
        %331 = vmatpush2.bf16.msra.mxu0 0
        %332 = vmatprep.subr.bf16.mxu0 0
        %333 = vmatpush2.bf16.msra.mxu0 0
        %334 = vmatprep.subr.bf16.mxu0 0
        %335 = vmatpush2.bf16.msra.mxu0 0
        %336 = vmatprep.subr.bf16.mxu0 0
        %337 = vmatpush2.bf16.msra.mxu0 0
        %338 = vmatprep.subr.bf16.mxu0 0
        %339 = vmatpush2.bf16.msra.mxu0 0
        %340 = vmatprep.subr.bf16.mxu0 0
        %341 = vmatpush2.bf16.msra.mxu0 0
        %342 = vmatprep.mubr.bf16.mxu0 0
        %343 = vmatmul.mubr.bf16.gmra.mxu0 %v287
        %v344 = vpop.f32.mrf.mxu0
        %v345 = vadd.f32 0.0, %v344
        %v346 = vpop.f32.mrf.mxu0
        %v347 = vpop.f32.mrf.mxu0
        %v348 = vadd.f32 0.0, %v347
        %v349 = vpop.f32.mrf.mxu0
        %350 = vmatprep.mubr.bf16.mxu0 0
        %351 = vmatmul.mubr.bf16.gmra.mxu0 %v290
        %v352 = vpop.f32.mrf.mxu0
        %v353 = vadd.f32 0.0, %v352
        %v354 = vpop.f32.mrf.mxu0
        %v355 = vpop.f32.mrf.mxu0
        %v356 = vadd.f32 0.0, %v355
        %v357 = vpop.f32.mrf.mxu0
        %358 = vmatprep.mubr.bf16.mxu0 0
        %359 = vmatmul.mubr.bf16.gmra.mxu0 %v293
        %v360 = vpop.f32.mrf.mxu0
        %v361 = vadd.f32 0.0, %v360
        %v362 = vpop.f32.mrf.mxu0
        %v363 = vpop.f32.mrf.mxu0
        %v364 = vadd.f32 0.0, %v363
        %v365 = vpop.f32.mrf.mxu0
        %366 = vmatprep.mubr.bf16.mxu0 0
        %367 = vmatmul.mubr.bf16.gmra.mxu0 %v296
        %v368 = vpop.f32.mrf.mxu0
        %v369 = vadd.f32 0.0, %v368
        %v370 = vpop.f32.mrf.mxu0
        %v371 = vpop.f32.mrf.mxu0
        %v372 = vadd.f32 0.0, %v371
        %v373 = vpop.f32.mrf.mxu0
        %374 = vmatprep.mubr.bf16.mxu0 0
        %375 = vmatmul.mubr.bf16.gmra.mxu0 %v299
        %v376 = vpop.f32.mrf.mxu0
        %v377 = vadd.f32 0.0, %v376
        %v378 = vpop.f32.mrf.mxu0
        %v379 = vpop.f32.mrf.mxu0
        %v380 = vadd.f32 0.0, %v379
        %v381 = vpop.f32.mrf.mxu0
        %382 = vmatprep.mubr.bf16.mxu0 0
        %383 = vmatmul.mubr.bf16.gmra.mxu0 %v302
        %v384 = vpop.f32.mrf.mxu0
        %v385 = vadd.f32 0.0, %v384
        %v386 = vpop.f32.mrf.mxu0
        %v387 = vpop.f32.mrf.mxu0
        %v388 = vadd.f32 0.0, %v387
        %v389 = vpop.f32.mrf.mxu0
        %390 = vmatprep.mubr.bf16.mxu0 0
        %391 = vmatmul.mubr.bf16.gmra.mxu0 %v305
        %v392 = vpop.f32.mrf.mxu0
        %v393 = vadd.f32 0.0, %v392
        %v394 = vpop.f32.mrf.mxu0
        %v395 = vpop.f32.mrf.mxu0
        %v396 = vadd.f32 0.0, %v395
        %v397 = vpop.f32.mrf.mxu0
        %398 = vmatprep.mubr.bf16.mxu0 0
        %399 = vmatmul.mubr.bf16.gmra.mxu0 %v308
        %v400 = vpop.f32.mrf.mxu0
        %v401 = vadd.f32 0.0, %v400
        %v402 = vpop.f32.mrf.mxu0
        %v403 = vpop.f32.mrf.mxu0
        %v404 = vadd.f32 0.0, %v403
        %v405 = vpop.f32.mrf.mxu0
        %406 = vdwg.mxu0
        %v407 = vpack.c.bf16 %v348, %v345
        %v408 = vpack.c.bf16 %v356, %v353
        %v409 = vpack.c.bf16 %v364, %v361
        %v410 = vpack.c.bf16 %v372, %v369
        %v411 = vpack.c.bf16 %v380, %v377
        %v412 = vpack.c.bf16 %v388, %v385
        %v413 = vpack.c.bf16 %v396, %v393
        %v414 = vpack.c.bf16 %v404, %v401
        %v423 = vunpack.c.l.b16 %v407
        %v424 = vunpack.c.h.b16 %v407
        %v425 = vunpack.c.l.b16 %v408
        %v426 = vunpack.c.h.b16 %v408
        %v427 = vunpack.c.l.b16 %v409
        %v428 = vunpack.c.h.b16 %v409
        %v429 = vunpack.c.l.b16 %v410
        %v430 = vunpack.c.h.b16 %v410
        %v431 = vunpack.c.l.b16 %v411
        %v432 = vunpack.c.h.b16 %v411
        %v433 = vunpack.c.l.b16 %v412
        %v434 = vunpack.c.h.b16 %v412
        %v435 = vunpack.c.l.b16 %v413
        %v436 = vunpack.c.h.b16 %v413
        %v437 = vunpack.c.l.b16 %v414
        %v438 = vunpack.c.h.b16 %v414
        %v439 = vpack.c.b16 %v423, %v423
        %v440 = vpack.c.b16 %v424, %v424
        %v441 = vpack.c.b16 %v425, %v425
        %v442 = vpack.c.b16 %v426, %v426
        %v443 = vpack.c.b16 %v427, %v427
        %v444 = vpack.c.b16 %v428, %v428
        %v445 = vpack.c.b16 %v429, %v429
        %v446 = vpack.c.b16 %v430, %v430
        %v447 = vpack.c.b16 %v431, %v431
        %v448 = vpack.c.b16 %v432, %v432
        %v449 = vpack.c.b16 %v433, %v433
        %v450 = vpack.c.b16 %v434, %v434
        %v451 = vpack.c.b16 %v435, %v435
        %v452 = vpack.c.b16 %v436, %v436
        %v453 = vpack.c.b16 %v437, %v437
        %v454 = vpack.c.b16 %v438, %v438
        %vm471 = vcmask 191488
        %472 = vst.msk [vmem:[#allocation2] sm:$0xf] %vm471, %v439
        %473 = vst.msk [vmem:[#allocation2 + $0x4] sm:$0xf] %vm471, %v440
        %474 = vst.msk [vmem:[#allocation2 + $0x8] sm:$0xf] %vm471, %v441
        %475 = vst.msk [vmem:[#allocation2 + $0xc] sm:$0xf] %vm471, %v442
        %476 = vst.msk [vmem:[#allocation2 + $0x10] sm:$0xf] %vm471, %v443
        %477 = vst.msk [vmem:[#allocation2 + $0x14] sm:$0xf] %vm471, %v444
        %478 = vst.msk [vmem:[#allocation2 + $0x18] sm:$0xf] %vm471, %v445
        %479 = vst.msk [vmem:[#allocation2 + $0x1c] sm:$0xf] %vm471, %v446
        %480 = vst.msk [vmem:[#allocation2 + $0x20] sm:$0xf] %vm471, %v447
        %481 = vst.msk [vmem:[#allocation2 + $0x24] sm:$0xf] %vm471, %v448
        %482 = vst.msk [vmem:[#allocation2 + $0x28] sm:$0xf] %vm471, %v449
        %483 = vst.msk [vmem:[#allocation2 + $0x2c] sm:$0xf] %vm471, %v450
        %484 = vst.msk [vmem:[#allocation2 + $0x30] sm:$0xf] %vm471, %v451
        %485 = vst.msk [vmem:[#allocation2 + $0x34] sm:$0xf] %vm471, %v452
        %486 = vst.msk [vmem:[#allocation2 + $0x38] sm:$0xf] %vm471, %v453
        %487 = vst.msk [vmem:[#allocation2 + $0x3c] sm:$0xf] %vm471, %v454
        %v488 = vld [vmem:[%s2] sm:$0xf]
        %v489 = vld [vmem:[%s3] sm:$0xff]
        %v490 = vld [vmem:[%s3 + $0x8] sm:$0xff]
        %v491 = vld [vmem:[%s3 + $0x10] sm:$0xff]
        %v492 = vld [vmem:[#allocation2] sm:$0xf]
        %493 = vst.msk [vmem:[#allocation3] sm:$0xf] %vm471, %v492
        %v494 = vld [vmem:[#allocation2 + $0x4] sm:$0xf]
        %496 = vrot.lane.b32.xlu0 %v494, 24
        %v497 = vpop.permute.xlu0 %496
        %vm499 = vcmask 388288
        %500 = vst.msk [vmem:[#allocation3] sm:$0xf] %vm499, %v497
        %v501 = vld [vmem:[#allocation2 + $0x8] sm:$0xf]
        %503 = vrot.lane.b32.xlu0 %v501, 48
        %v504 = vpop.permute.xlu0 %503
        %vm506 = vcmask 585088
        %507 = vst.msk [vmem:[#allocation3] sm:$0xf] %vm506, %v504
        %v508 = vld [vmem:[#allocation2 + $0xc] sm:$0xf]
        %510 = vrot.lane.b32.xlu0 %v508, 72
        %v511 = vpop.permute.xlu0 %510
        %vm513 = vcmask 781888
        %514 = vst.msk [vmem:[#allocation3] sm:$0xf] %vm513, %v511
        %v515 = vld [vmem:[#allocation2 + $0x10] sm:$0xf]
        %517 = vrot.lane.b32.xlu0 %v515, 96
        %v518 = vpop.permute.xlu0 %517
        %vm520 = vcmask 978688
        %521 = vst.msk [vmem:[#allocation3] sm:$0xf] %vm520, %v518
        %v522 = vld [vmem:[#allocation2 + $0x14] sm:$0xf]
        %524 = vrot.lane.b32.xlu0 %v522, 120
        %v525 = vpop.permute.xlu0 %524
        %v526 = vrot.slane %v525, 4
        %vm527 = vcmask 982016
        %v528 = vsel %vm527, %v526, %v525
        %vm530 = vcmask 1044416
        %vm531 = vcmask 130052
        %vm532 = vmor %vm531, %vm530
        %533 = vst.msk [vmem:[#allocation3] sm:$0xff] %vm532, %v528
        %v534 = vld [vmem:[#allocation2 + $0x18] sm:$0xf]
        %536 = vrot.lane.b32.xlu0 %v534, 16
        %v537 = vpop.permute.xlu0 %536
        %vm539 = vcmask 322688
        %540 = vst.msk [vmem:[#allocation3 + $0x4] sm:$0xf] %vm539, %v537
        %v541 = vld [vmem:[#allocation2 + $0x1c] sm:$0xf]
        %543 = vrot.lane.b32.xlu0 %v541, 40
        %v544 = vpop.permute.xlu0 %543
        %vm546 = vcmask 519488
        %547 = vst.msk [vmem:[#allocation3 + $0x4] sm:$0xf] %vm546, %v544
        %v548 = vld [vmem:[#allocation2 + $0x20] sm:$0xf]
        %550 = vrot.lane.b32.xlu0 %v548, 64
        %v551 = vpop.permute.xlu0 %550
        %vm553 = vcmask 716288
        %554 = vst.msk [vmem:[#allocation3 + $0x4] sm:$0xf] %vm553, %v551
        %v555 = vld [vmem:[#allocation2 + $0x24] sm:$0xf]
        %557 = vrot.lane.b32.xlu0 %v555, 88
        %v558 = vpop.permute.xlu0 %557
        %vm560 = vcmask 913088
        %561 = vst.msk [vmem:[#allocation3 + $0x4] sm:$0xf] %vm560, %v558
        %v562 = vld [vmem:[#allocation2 + $0x28] sm:$0xf]
        %564 = vrot.lane.b32.xlu0 %v562, 112
        %v565 = vpop.permute.xlu0 %564
        %v566 = vrot.slane %v565, 4
        %vm567 = vcmask 916480
        %v568 = vsel %vm567, %v566, %v565
        %vm570 = vcmask 1044352
        %vm571 = vcmask 64516
        %vm572 = vmor %vm571, %vm570
        %573 = vst.msk [vmem:[#allocation3 + $0x4] sm:$0xff] %vm572, %v568
        %v574 = vld [vmem:[#allocation2 + $0x2c] sm:$0xf]
        %576 = vrot.lane.b32.xlu0 %v574, 8
        %v577 = vpop.permute.xlu0 %576
        %vm579 = vcmask 257088
        %580 = vst.msk [vmem:[#allocation3 + $0x8] sm:$0xf] %vm579, %v577
        %v581 = vld [vmem:[#allocation2 + $0x30] sm:$0xf]
        %583 = vrot.lane.b32.xlu0 %v581, 32
        %v584 = vpop.permute.xlu0 %583
        %vm586 = vcmask 453888
        %587 = vst.msk [vmem:[#allocation3 + $0x8] sm:$0xf] %vm586, %v584
        %v588 = vld [vmem:[#allocation2 + $0x34] sm:$0xf]
        %590 = vrot.lane.b32.xlu0 %v588, 56
        %v591 = vpop.permute.xlu0 %590
        %vm593 = vcmask 650688
        %594 = vst.msk [vmem:[#allocation3 + $0x8] sm:$0xf] %vm593, %v591
        %v595 = vld [vmem:[#allocation2 + $0x38] sm:$0xf]
        %597 = vrot.lane.b32.xlu0 %v595, 80
        %v598 = vpop.permute.xlu0 %597
        %vm600 = vcmask 847488
        %601 = vst.msk [vmem:[#allocation3 + $0x8] sm:$0xf] %vm600, %v598
        %v602 = vld [vmem:[#allocation2 + $0x3c] sm:$0xf]
        %604 = vrot.lane.b32.xlu0 %v602, 104
        %v605 = vpop.permute.xlu0 %604
        %vm607 = vcmask 1044288
        %608 = vst.msk [vmem:[#allocation3 + $0x8] sm:$0xf] %vm607, %v605
        %v609 = vld [vmem:[#allocation3] sm:$0xff]
        %v610 = vld [vmem:[#allocation3 + $0x8] sm:$0xf]
        %613 = vrot.lane.b32.xlu0 %v609, 127
        %v614 = vpop.permute.xlu0 %613
        %615 = vrot.lane.b32.xlu0 %v610, 127
        %v616 = vpop.permute.xlu0 %615
        %v617 = vrot.slane %v614, 4
        %v618 = vrot.slane %v616, 4
        %vm619 = vcmask 1043456
        %v620 = vsel %vm619, %v617, %v618
        %vm621 = vcmask 1039360
        %v622 = vsel %vm621, %v614, %v620
        %625 = vst [vmem:[#allocation3 + $0xc] sm:$0xff] %v622
        %vm626 = vcmask 1035264
        %627 = vst.msk [vmem:[#allocation3 + $0x14] sm:$0xf] %vm626, %v616
        %vm628 = vcmask 1044472
        %629 = vst.msk [vmem:[#allocation3 + $0x14] sm:$0xf] %vm628, 0
        %630 = vrot.lane.b32.xlu0 %v609, 126
        %v631 = vpop.permute.xlu0 %630
        %632 = vrot.lane.b32.xlu0 %v610, 126
        %v633 = vpop.permute.xlu0 %632
        %v634 = vrot.slane %v631, 4
        %v635 = vrot.slane %v633, 4
        %v636 = vsel %vm619, %v634, %v635
        %vm637 = vcmask 1031168
        %v638 = vsel %vm637, %v631, %v636
        %641 = vst [vmem:[#allocation3 + $0x18] sm:$0xff] %v638
        %vm642 = vcmask 1027072
        %643 = vst.msk [vmem:[#allocation3 + $0x20] sm:$0xf] %vm642, %v633
        %vm644 = vcmask 1044464
        %645 = vst.msk [vmem:[#allocation3 + $0x20] sm:$0xf] %vm644, 0
        %646 = vrot.lane.b32.xlu0 %v609, 125
        %v647 = vpop.permute.xlu0 %646
        %648 = vrot.lane.b32.xlu0 %v610, 125
        %v649 = vpop.permute.xlu0 %648
        %v650 = vrot.slane %v647, 4
        %v651 = vrot.slane %v649, 4
        %v652 = vsel %vm619, %v650, %v651
        %vm653 = vcmask 1022976
        %v654 = vsel %vm653, %v647, %v652
        %657 = vst [vmem:[#allocation3 + $0x24] sm:$0xff] %v654
        %vm658 = vcmask 1018880
        %659 = vst.msk [vmem:[#allocation3 + $0x2c] sm:$0xf] %vm658, %v649
        %vm660 = vcmask 1044456
        %661 = vst.msk [vmem:[#allocation3 + $0x2c] sm:$0xf] %vm660, 0
        %662 = vrot.lane.b32.xlu0 %v609, 124
        %v663 = vpop.permute.xlu0 %662
        %664 = vrot.lane.b32.xlu0 %v610, 124
        %v665 = vpop.permute.xlu0 %664
        %v666 = vrot.slane %v663, 4
        %v667 = vrot.slane %v665, 4
        %v668 = vsel %vm619, %v666, %v667
        %vm669 = vcmask 1014784
        %v670 = vsel %vm669, %v663, %v668
        %673 = vst [vmem:[#allocation3 + $0x30] sm:$0xff] %v670
        %vm674 = vcmask 1010688
        %675 = vst.msk [vmem:[#allocation3 + $0x38] sm:$0xf] %vm674, %v665
        %vm676 = vcmask 1044448
        %677 = vst.msk [vmem:[#allocation3 + $0x38] sm:$0xf] %vm676, 0
        %678 = vrot.lane.b32.xlu0 %v609, 123
        %v679 = vpop.permute.xlu0 %678
        %680 = vrot.lane.b32.xlu0 %v610, 123
        %v681 = vpop.permute.xlu0 %680
        %v682 = vrot.slane %v679, 4
        %v683 = vrot.slane %v681, 4
        %v684 = vsel %vm619, %v682, %v683
        %vm685 = vcmask 1006592
        %v686 = vsel %vm685, %v679, %v684
        %689 = vst [vmem:[#allocation3 + $0x3c] sm:$0xff] %v686
        %vm690 = vcmask 1002496
        %691 = vst.msk [vmem:[#allocation3 + $0x44] sm:$0xf] %vm690, %v681
        %vm692 = vcmask 1044440
        %693 = vst.msk [vmem:[#allocation3 + $0x44] sm:$0xf] %vm692, 0
        %694 = vrot.lane.b32.xlu0 %v609, 122
        %v695 = vpop.permute.xlu0 %694
        %696 = vrot.lane.b32.xlu0 %v610, 122
        %v697 = vpop.permute.xlu0 %696
        %v698 = vrot.slane %v695, 4
        %v699 = vrot.slane %v697, 4
        %v700 = vsel %vm619, %v698, %v699
        %vm701 = vcmask 998400
        %v702 = vsel %vm701, %v695, %v700
        %705 = vst [vmem:[#allocation3 + $0x48] sm:$0xff] %v702
        %vm706 = vcmask 994304
        %707 = vst.msk [vmem:[#allocation3 + $0x50] sm:$0xf] %vm706, %v697
        %vm708 = vcmask 1044432
        %709 = vst.msk [vmem:[#allocation3 + $0x50] sm:$0xf] %vm708, 0
        %710 = vrot.lane.b32.xlu0 %v609, 121
        %v711 = vpop.permute.xlu0 %710
        %712 = vrot.lane.b32.xlu0 %v610, 121
        %v713 = vpop.permute.xlu0 %712
        %v714 = vrot.slane %v711, 4
        %v715 = vrot.slane %v713, 4
        %v716 = vsel %vm619, %v714, %v715
        %vm717 = vcmask 990208
        %v718 = vsel %vm717, %v711, %v716
        %721 = vst [vmem:[#allocation3 + $0x54] sm:$0xff] %v718
        %vm722 = vcmask 986112
        %723 = vst.msk [vmem:[#allocation3 + $0x5c] sm:$0xf] %vm722, %v713
        %vm724 = vcmask 1044424
        %725 = vst.msk [vmem:[#allocation3 + $0x5c] sm:$0xf] %vm724, 0
        %726 = vrot.lane.b32.xlu0 %v609, 120
        %v727 = vpop.permute.xlu0 %726
        %728 = vrot.lane.b32.xlu0 %v610, 120
        %v729 = vpop.permute.xlu0 %728
        %v730 = vrot.slane %v727, 4
        %v731 = vrot.slane %v729, 4
        %v732 = vsel %vm619, %v730, %v731
        %v733 = vsel %vm527, %v727, %v732
        %736 = vst [vmem:[#allocation3 + $0x60] sm:$0xff] %v733
        %vm737 = vcmask 977920
        %738 = vst.msk [vmem:[#allocation3 + $0x68] sm:$0xf] %vm737, %v729
        %739 = vst.msk [vmem:[#allocation3 + $0x68] sm:$0xf] %vm530, 0
        %v740 = vld [vmem:[#allocation3] sm:$0xff]
        %v741 = vld [vmem:[#allocation3 + $0x8] sm:$0xf]
        %v742 = vld [vmem:[#allocation3 + $0xc] sm:$0xff]
        %v743 = vld [vmem:[#allocation3 + $0x14] sm:$0xf]
        %v744 = vld [vmem:[#allocation3 + $0x18] sm:$0xff]
        %v745 = vld [vmem:[#allocation3 + $0x20] sm:$0xf]
        %v746 = vld [vmem:[#allocation3 + $0x24] sm:$0xff]
        %v747 = vld [vmem:[#allocation3 + $0x2c] sm:$0xf]
        %v748 = vld [vmem:[#allocation3 + $0x30] sm:$0xff]
        %v749 = vld [vmem:[#allocation3 + $0x38] sm:$0xf]
        %v750 = vld [vmem:[#allocation3 + $0x3c] sm:$0xff]
        %v751 = vld [vmem:[#allocation3 + $0x44] sm:$0xf]
        %v752 = vld [vmem:[#allocation3 + $0x48] sm:$0xff]
        %v753 = vld [vmem:[#allocation3 + $0x50] sm:$0xf]
        %v754 = vld [vmem:[#allocation3 + $0x54] sm:$0xff]
        %v755 = vld [vmem:[#allocation3 + $0x5c] sm:$0xf]
        %v756 = vld [vmem:[#allocation3 + $0x60] sm:$0xff]
        %v757 = vld [vmem:[#allocation3 + $0x68] sm:$0xf]
        %v776 = vunpack.c.l.b16 %v740
        %v777 = vunpack.c.h.b16 %v740
        %v778 = vunpack.c.l.b16 %v741
        %v779 = vunpack.c.l.b16 %v742
        %v780 = vunpack.c.h.b16 %v742
        %v781 = vunpack.c.l.b16 %v743
        %v782 = vunpack.c.l.b16 %v744
        %v783 = vunpack.c.h.b16 %v744
        %v784 = vunpack.c.l.b16 %v745
        %v785 = vunpack.c.l.b16 %v746
        %v786 = vunpack.c.h.b16 %v746
        %v787 = vunpack.c.l.b16 %v747
        %v788 = vunpack.c.l.b16 %v748
        %v789 = vunpack.c.h.b16 %v748
        %v790 = vunpack.c.l.b16 %v749
        %v791 = vunpack.c.l.b16 %v750
        %v792 = vunpack.c.h.b16 %v750
        %v793 = vunpack.c.l.b16 %v751
        %v794 = vunpack.c.l.b16 %v752
        %v795 = vunpack.c.h.b16 %v752
        %v796 = vunpack.c.l.b16 %v753
        %v797 = vunpack.c.l.b16 %v754
        %v798 = vunpack.c.h.b16 %v754
        %v799 = vunpack.c.l.b16 %v755
        %v800 = vunpack.c.l.b16 %v756
        %v801 = vunpack.c.h.b16 %v756
        %v802 = vunpack.c.l.b16 %v757
        %v803 = vpack.c.b16 %v779, %v776
        %v804 = vpack.c.b16 %v780, %v777
        %v805 = vpack.c.b16 %v781, %v778
        %v806 = vpack.c.b16 %v785, %v782
        %v807 = vpack.c.b16 %v786, %v783
        %v808 = vpack.c.b16 %v787, %v784
        %v809 = vpack.c.b16 %v791, %v788
        %v810 = vpack.c.b16 %v792, %v789
        %v811 = vpack.c.b16 %v793, %v790
        %v812 = vpack.c.b16 %v797, %v794
        %v813 = vpack.c.b16 %v798, %v795
        %v814 = vpack.c.b16 %v799, %v796
        %v815 = vpack.c.b16 %v800, %v800
        %v816 = vpack.c.b16 %v801, %v801
        %v817 = vpack.c.b16 %v802, %v802
        %vm830 = vcmask 588800
        %v832 = vsel %vm830, %v488, 0
        %vm834 = vcmask 1043456
        %v836 = vsel %vm834, %v815, 0
        %v839 = vsel %vm834, %v816, 0
        %v842 = vsel %vm834, %v817, 0
        %844 = vmatprep.subr.bf16.mxu0 0
        %845 = vmatpush1.bf16.msra.mxu0 0
        %846 = vmatprep.subr.bf16.mxu0 0
        %847 = vmatpush1.bf16.msra.mxu0 0
        %848 = vmatprep.subr.bf16.mxu0 0
        %849 = vmatpush1.bf16.msra.mxu0 0
        %850 = vmatprep.subr.bf16.mxu0 %v839
        %851 = vmatpush1.bf16.msra.mxu0 %v836
        %852 = vmatprep.subr.bf16.mxu0 %v813
        %853 = vmatpush1.bf16.msra.mxu0 %v812
        %854 = vmatprep.subr.bf16.mxu0 %v810
        %855 = vmatpush1.bf16.msra.mxu0 %v809
        %856 = vmatprep.subr.bf16.mxu0 %v807
        %857 = vmatpush1.bf16.msra.mxu0 %v806
        %858 = vmatprep.subr.bf16.mxu0 %v804
        %859 = vmatpush1.bf16.msra.mxu0 %v803
        %860 = vmatprep.subr.bf16.mxu0 0
        %861 = vmatpush2.bf16.msra.mxu0 0
        %862 = vmatprep.subr.bf16.mxu0 0
        %863 = vmatpush2.bf16.msra.mxu0 0
        %864 = vmatprep.subr.bf16.mxu0 0
        %865 = vmatpush2.bf16.msra.mxu0 0
        %866 = vmatprep.subr.bf16.mxu0 0
        %867 = vmatpush2.bf16.msra.mxu0 0
        %868 = vmatprep.subr.bf16.mxu0 0
        %869 = vmatpush2.bf16.msra.mxu0 0
        %870 = vmatprep.subr.bf16.mxu0 0
        %871 = vmatpush2.bf16.msra.mxu0 0
        %872 = vmatprep.subr.bf16.mxu0 0
        %873 = vmatpush2.bf16.msra.mxu0 0
        %874 = vmatprep.subr.bf16.mxu0 0
        %875 = vmatpush2.bf16.msra.mxu0 0
        %876 = vmatprep.mubr.bf16.mxu0 0
        %877 = vmatmul.mubr.bf16.gmra.mxu0 %v832
        %v878 = vpop.f32.mrf.mxu0
        %v879 = vadd.f32 %v489, %v878
        %v880 = vpop.f32.mrf.mxu0
        %v881 = vadd.f32 %v490, %v880
        %v882 = vpop.f32.mrf.mxu0
        %v883 = vpop.f32.mrf.mxu0
        %884 = vdwg.mxu0
        %885 = vmatprep.subr.bf16.mxu0 0
        %886 = vmatpush1.bf16.msra.mxu0 0
        %887 = vmatprep.subr.bf16.mxu0 0
        %888 = vmatpush1.bf16.msra.mxu0 0
        %889 = vmatprep.subr.bf16.mxu0 0
        %890 = vmatpush1.bf16.msra.mxu0 0
        %891 = vmatprep.subr.bf16.mxu0 0
        %892 = vmatpush1.bf16.msra.mxu0 %v842
        %893 = vmatprep.subr.bf16.mxu0 0
        %894 = vmatpush1.bf16.msra.mxu0 %v814
        %895 = vmatprep.subr.bf16.mxu0 0
        %896 = vmatpush1.bf16.msra.mxu0 %v811
        %897 = vmatprep.subr.bf16.mxu0 0
        %898 = vmatpush1.bf16.msra.mxu0 %v808
        %899 = vmatprep.subr.bf16.mxu0 0
        %900 = vmatpush1.bf16.msra.mxu0 %v805
        %901 = vmatprep.subr.bf16.mxu0 0
        %902 = vmatpush2.bf16.msra.mxu0 0
        %903 = vmatprep.subr.bf16.mxu0 0
        %904 = vmatpush2.bf16.msra.mxu0 0
        %905 = vmatprep.subr.bf16.mxu0 0
        %906 = vmatpush2.bf16.msra.mxu0 0
        %907 = vmatprep.subr.bf16.mxu0 0
        %908 = vmatpush2.bf16.msra.mxu0 0
        %909 = vmatprep.subr.bf16.mxu0 0
        %910 = vmatpush2.bf16.msra.mxu0 0
        %911 = vmatprep.subr.bf16.mxu0 0
        %912 = vmatpush2.bf16.msra.mxu0 0
        %913 = vmatprep.subr.bf16.mxu0 0
        %914 = vmatpush2.bf16.msra.mxu0 0
        %915 = vmatprep.subr.bf16.mxu0 0
        %916 = vmatpush2.bf16.msra.mxu0 0
        %917 = vmatprep.mubr.bf16.mxu0 0
        %918 = vmatmul.mubr.bf16.gmra.mxu0 %v832
        %v919 = vpop.f32.mrf.mxu0
        %v920 = vadd.f32 %v491, %v919
        %v921 = vpop.f32.mrf.mxu0
        %v922 = vpop.f32.mrf.mxu0
        %v923 = vpop.f32.mrf.mxu0
        %924 = vdwg.mxu0
        %v925 = vpack.c.bf16 %v879, %v879
        %v926 = vpack.c.bf16 %v881, %v881
        %v927 = vpack.c.bf16 %v920, %v920
        %v931 = vunpack.c.l.b16 %v925
        %v932 = vunpack.c.l.b16 %v926
        %v933 = vunpack.c.l.b16 %v927
        %v934 = vpack.c.b16 %v932, %v931
        %v935 = vpack.c.b16 %v933, %v933
        %938 = vst [vmem:[%s190] sm:$0xff] %v934
        %939 = vst [vmem:[%s190 + $0x8] sm:$0xf] %v935
        %s940 = sand.u32 %s115, 1
        %s941 = scalar_lea.sflag [#allocation5], %s940
        %s942 = sand.u32 %s115, 1
        %s943 = smul.addr %s942, 12
        %s944 = scalar_lea.vmem [#allocation4], %s943
        // Predicated region
        $region37: #{tpu_custom_call.1} parent=35 // pred_check
          %p945 = pneg %p125
        $region38: #{tpu_custom_call.1} parent=35 // pred_check_branch
          %947 = sbr.rel (%p945) target = $region40
        $region39: #{tpu_custom_call.1} parent=35 // pred_region
          %s949 = ssub.s32 192, 192
          %950 = vsyncadd %s941, %s949
          %s951 = smul.addr %s18, 3
          %s952 = smul.addr %s951, 64
          %s953 = scalar_lea.hbm %s4, %s952
          %s955 = sshll.u32 %s944, 4
          %s956 = int_to_ptr.vmem [resolvable:$true] %s955
          %958 = dma.vmem_to_hbm [thread:$0]  %s956, 192, %s953, %s941
        $region40: #{tpu_custom_call.1} parent=35 // pred_fallthru
          _
      $region36: #{tpu_custom_call.1} parent=5 // pred_fallthru
        _
      %p959 = scmp.le.s32.totalorder 2, %s13
      // Predicated region
      $region41: #{tpu_custom_call.1} parent=5 // pred_check
        %p960 = pneg %p959
      $region42: #{tpu_custom_call.1} parent=5 // pred_check_branch
        %962 = sbr.rel (%p960) target = $region44
      $region43: #{tpu_custom_call.1} parent=5 // pred_region
        %s963 = ssub.s32 %s13, 2
        // Predicated region
        $region45: #{tpu_custom_call.1} parent=43 // pred_check
          %p964 = pneg %p131
        $region46: #{tpu_custom_call.1} parent=43 // pred_check_branch
          %966 = sbr.rel (%p964) target = $region48
        $region47: #{tpu_custom_call.1} parent=43 // pred_region
          %s967 = sand.u32 %s116, 1
          %s968 = scalar_lea.sflag [#allocation5], %s967
          %s969 = sand.u32 %s116, 1
          %s970 = smul.addr %s969, 12
          %s971 = scalar_lea.vmem [#allocation4], %s970
          %972 = dma.done %s968, 192
        $region48: #{tpu_custom_call.1} parent=43 // pred_fallthru
          _
      $region44: #{tpu_custom_call.1} parent=5 // pred_fallthru
        _
    $region6: #{tpu_custom_call.1} parent=1 // loop_footer
      %s17 = sadd.s32 1, %s13
    $region7: #{tpu_custom_call.1} parent=1 // loop_footer_branch
      %12 = sbr.rel target = $region3
    $region8: #{tpu_custom_call.1} parent=1 // loop_exit
      _
    %973 = vsyncpa [#allocation5], 1
    %s974 = scalar_lea.sflag [#allocation5], 1
    %975 = vsyncpa %s974, 1

// kernel: tpu_custom_call.1
$region0: #{tpu_custom_call.1}
  #allocation0 [shape = 'u32[]', space=smem, size = 0x4, offset = 0x4, fixed_abs, tag = 'smem constant byte address 0x4 - core index']
  #allocation1 [shape = 'u32[144,128]{1,0:T(1,128)}', space=vmem, size = 0x12000, scoped, tag = 'internal scratch']
  #allocation2 [shape = 'bf16[128,24]{1,0:T(8,128)(2,1)}', space=vmem, size = 0x8000, scoped, tag = 'scratch operand']
  #allocation3 [shape = 'bf16[72,384]{1,0:T(8,128)(2,1)}', space=vmem, size = 0xd800, scoped, tag = 'scratch operand']
  %s0 = inlined_call_operand.vmem [shape: bf16[2,64,24], index: 0, kind: input, shape index: {}]
  %s1 = inlined_call_operand.vmem [shape: bf16[128,64], index: 1, kind: input, shape index: {}]
  %s2 = inlined_call_operand.vmem [shape: bf16[8,72], index: 2, kind: input, shape index: {}]
  %s3 = inlined_call_operand.vmem [shape: f32[8,384], index: 3, kind: input, shape index: {}]
  %s4 = inlined_call_operand.hbm [shape: bf16[2,8,384], index: 4, kind: output, shape index: {}]
  %s5 = sld [smem:[#allocation0]]
  $region49: #{tpu_custom_call.1} parent=0
    _
  %s7 = ssub.s32 1, %s5
  %s8 = scalar_select 0, %s7, %s5
  $region1: #{tpu_custom_call.1} parent=0
    #allocation4 [shape = 'u8[12288]{0}', space=vmem, size = 0x3000, scoped, tag = 'output window, operand 0']
    #allocation5 [shape = 's32[2]{0}', space=sflag, size = 0x8, scoped, tag = 'scoped memory for tpu_custom_call.1']
    %9 = vsyncpa [#allocation5], 0
    %s10 = scalar_lea.sflag [#allocation5], 1
    %11 = vsyncpa %s10, 0
    loop: start=0, step=1, limit=4
    $region2: #{tpu_custom_call.1} parent=1 // loop_pre_header
      _
    $region3: #{tpu_custom_call.1} parent=1 // loop_header
      %s13 = sphi 0, %s17
      %p14 = scmp.ge.s32.totalorder %s13, 4
      %s23 = sphi 0, %s25
      %s26 = sphi 0, %s23
      %s27 = sphi 0, %s26
      %s43 = sphi 0, %s27
      %s47 = sphi 0, %s47
      %s49 = sphi 0, %s47
      %s50 = sphi 0, %s49
      %s64 = sphi 0, %s50
      %s68 = sphi 0, %s68
      %s70 = sphi 0, %s68
      %s71 = sphi 0, %s70
      %s85 = sphi 0, %s71
      %s89 = sphi 0, %s89
      %s91 = sphi 0, %s89
      %s92 = sphi 0, %s91
      %s106 = sphi 0, %s92
      %s112 = sphi 0, %s114
      %s115 = sphi 0, %s112
      %s116 = sphi 0, %s115
      %s132 = sphi 0, %s116
    $region4: #{tpu_custom_call.1} parent=1 // loop_header_branch
      %16 = sbr.rel (%p14) target = $region8
    $region5: #{tpu_custom_call.1} parent=1 // loop_body
      %s18 = ssub.s32 %s13, 1
      %s19 = ssub.s32 %s13, 2
      %s20 = sadd.s32 %s13, 1
      %s21 = ssub.s32 %s13, %s20
      %p22 = scmp.eq.s32.totalorder %s21, 0
      %s24 = sadd.s32 %s23, 1
      %s25 = scalar_select %p22, %s23, %s24
      %p28 = pneg %p22
      %p29 = scmp.eq.s32.totalorder %s13, 1
      %p30 = por %p28, %p29
      %p31 = scmp.ne.s32.totalorder %s23, %s26
      %p32 = scmp.eq.s32.totalorder %s13, 0
      %p33 = por %p31, %p32
      %p34 = scmp.ne.s32.totalorder %s23, %s26
      %p35 = scmp.eq.s32.totalorder %s18, 1
      %p36 = por %p34, %p35
      %p37 = scmp.ne.s32.totalorder %s26, %s27
      %p38 = scmp.eq.s32.totalorder %s18, 0
      %p39 = por %p37, %p38
      %p40 = scmp.ne.s32.totalorder %s26, %s27
      %p41 = scmp.eq.s32.totalorder %s19, 1
      %p42 = por %p40, %p41
      %p44 = scmp.ne.s32.totalorder %s27, %s43
      %p45 = scmp.eq.s32.totalorder %s19, 0
      %p46 = por %p44, %p45
      %s48 = sadd.s32 %s47, 1
      %p51 = scmp.eq.s32.totalorder %s13, 1
      %p52 = scmp.ne.s32.totalorder %s47, %s49
      %p53 = scmp.eq.s32.totalorder %s13, 0
      %p54 = por %p52, %p53
      %p55 = scmp.ne.s32.totalorder %s47, %s49
      %p56 = scmp.eq.s32.totalorder %s18, 1
      %p57 = por %p55, %p56
      %p58 = scmp.ne.s32.totalorder %s49, %s50
      %p59 = scmp.eq.s32.totalorder %s18, 0
      %p60 = por %p58, %p59
      %p61 = scmp.ne.s32.totalorder %s49, %s50
      %p62 = scmp.eq.s32.totalorder %s19, 1
      %p63 = por %p61, %p62
      %p65 = scmp.ne.s32.totalorder %s50, %s64
      %p66 = scmp.eq.s32.totalorder %s19, 0
      %p67 = por %p65, %p66
      %s69 = sadd.s32 %s68, 1
      %p72 = scmp.eq.s32.totalorder %s13, 1
      %p73 = scmp.ne.s32.totalorder %s68, %s70
      %p74 = scmp.eq.s32.totalorder %s13, 0
      %p75 = por %p73, %p74
      %p76 = scmp.ne.s32.totalorder %s68, %s70
      %p77 = scmp.eq.s32.totalorder %s18, 1
      %p78 = por %p76, %p77
      %p79 = scmp.ne.s32.totalorder %s70, %s71
      %p80 = scmp.eq.s32.totalorder %s18, 0
      %p81 = por %p79, %p80
      %p82 = scmp.ne.s32.totalorder %s70, %s71
      %p83 = scmp.eq.s32.totalorder %s19, 1
      %p84 = por %p82, %p83
      %p86 = scmp.ne.s32.totalorder %s71, %s85
      %p87 = scmp.eq.s32.totalorder %s19, 0
      %p88 = por %p86, %p87
      %s90 = sadd.s32 %s89, 1
      %p93 = scmp.eq.s32.totalorder %s13, 1
      %p94 = scmp.ne.s32.totalorder %s89, %s91
      %p95 = scmp.eq.s32.totalorder %s13, 0
      %p96 = por %p94, %p95
      %p97 = scmp.ne.s32.totalorder %s89, %s91
      %p98 = scmp.eq.s32.totalorder %s18, 1
      %p99 = por %p97, %p98
      %p100 = scmp.ne.s32.totalorder %s91, %s92
      %p101 = scmp.eq.s32.totalorder %s18, 0
      %p102 = por %p100, %p101
      %p103 = scmp.ne.s32.totalorder %s91, %s92
      %p104 = scmp.eq.s32.totalorder %s19, 1
      %p105 = por %p103, %p104
      %p107 = scmp.ne.s32.totalorder %s92, %s106
      %p108 = scmp.eq.s32.totalorder %s19, 0
      %p109 = por %p107, %p108
      %s110 = ssub.s32 %s13, %s20
      %p111 = scmp.eq.s32.totalorder %s110, 0
      %s113 = sadd.s32 %s112, 1
      %s114 = scalar_select %p111, %s112, %s113
      %p117 = pneg %p111
      %p118 = scmp.eq.s32.totalorder %s13, 1
      %p119 = por %p117, %p118
      %p120 = scmp.ne.s32.totalorder %s112, %s115
      %p121 = scmp.eq.s32.totalorder %s13, 0
      %p122 = por %p120, %p121
      %p123 = scmp.ne.s32.totalorder %s112, %s115
      %p124 = scmp.eq.s32.totalorder %s18, 1
      %p125 = por %p123, %p124
      %p126 = scmp.ne.s32.totalorder %s115, %s116
      %p127 = scmp.eq.s32.totalorder %s18, 0
      %p128 = por %p126, %p127
      %p129 = scmp.ne.s32.totalorder %s115, %s116
      %p130 = scmp.eq.s32.totalorder %s19, 1
      %p131 = por %p129, %p130
      %p133 = scmp.ne.s32.totalorder %s116, %s132
      %p134 = scmp.eq.s32.totalorder %s19, 0
      %p135 = por %p133, %p134
      %p136 = scmp.le.s32.totalorder 1, %s13
      %p137 = scmp.lt.s32.totalorder %s13, 3
      %p138 = pnand %p136, %p137
      %p139 = pneg %p138
      // Predicated region
      $region9: #{tpu_custom_call.1} parent=5 // pred_check
        _
      $region10: #{tpu_custom_call.1} parent=5 // pred_check_branch
        %141 = sbr.rel (%p138) target = $region12
      $region11: #{tpu_custom_call.1} parent=5 // pred_region
        %s142 = ssub.s32 %s13, 1
        // Predicated region
        $region13: #{tpu_custom_call.1} parent=11 // pred_check
          %p143 = pneg %p60
        $region14: #{tpu_custom_call.1} parent=11 // pred_check_branch
          %145 = sbr.rel (%p143) target = $region16
        $region15: #{tpu_custom_call.1} parent=11 // pred_region
          _
        $region16: #{tpu_custom_call.1} parent=11 // pred_fallthru
          _
        // Predicated region
        $region17: #{tpu_custom_call.1} parent=11 // pred_check
          %p146 = pneg %p81
        $region18: #{tpu_custom_call.1} parent=11 // pred_check_branch
          %148 = sbr.rel (%p146) target = $region20
        $region19: #{tpu_custom_call.1} parent=11 // pred_region
          _
        $region20: #{tpu_custom_call.1} parent=11 // pred_fallthru
          _
        // Predicated region
        $region21: #{tpu_custom_call.1} parent=11 // pred_check
          %p149 = pneg %p102
        $region22: #{tpu_custom_call.1} parent=11 // pred_check_branch
          %151 = sbr.rel (%p149) target = $region24
        $region23: #{tpu_custom_call.1} parent=11 // pred_region
          _
        $region24: #{tpu_custom_call.1} parent=11 // pred_fallthru
          _
      $region12: #{tpu_custom_call.1} parent=5 // pred_fallthru
        _
      %p152 = scmp.lt.s32.totalorder %s13, 2
      // Predicated region
      $region25: #{tpu_custom_call.1} parent=5 // pred_check
        %p153 = pneg %p152
      $region26: #{tpu_custom_call.1} parent=5 // pred_check_branch
        %155 = sbr.rel (%p153) target = $region28
      $region27: #{tpu_custom_call.1} parent=5 // pred_region
        // Predicated region
        $region29: #{tpu_custom_call.1} parent=27 // pred_check
          %p156 = pneg %p33
        $region30: #{tpu_custom_call.1} parent=27 // pred_check_branch
          %158 = sbr.rel (%p156) target = $region32
        $region31: #{tpu_custom_call.1} parent=27 // pred_region
          %p159 = scmp.lt.s32.totalorder %s13, 1
          %s160 = scalar_select %p159, %s13, 1
          %s161 = smul.addr %s160, 8
          %s162 = smul.addr %s161, 4
          %s163 = scalar_lea.vmem %s0, %s162
        $region32: #{tpu_custom_call.1} parent=27 // pred_fallthru
          _
      $region28: #{tpu_custom_call.1} parent=5 // pred_fallthru
        _
      %p164 = scmp.le.s32.totalorder 1, %s13
      %p165 = scmp.lt.s32.totalorder %s13, 3
      %p166 = pnand %p164, %p165
      %p167 = pneg %p166
      // Predicated region
      $region33: #{tpu_custom_call.1} parent=5 // pred_check
        _
      $region34: #{tpu_custom_call.1} parent=5 // pred_check_branch
        %169 = sbr.rel (%p166) target = $region36
      $region35: #{tpu_custom_call.1} parent=5 // pred_region
        %s170 = ssub.s32 %s13, 1
        %p171 = scmp.lt.s32.totalorder %s18, 1
        %s172 = scalar_select %p171, %s18, 1
        %s173 = smul.addr %s172, 8
        %s174 = smul.addr %s173, 4
        %s175 = scalar_lea.vmem %s0, %s174
        %p176 = pneg %p39
        %p177 = pneg %p36
        %p178 = pneg %p60
        %p179 = pneg %p57
        %p180 = pneg %p81
        %p181 = pneg %p78
        %p182 = pneg %p102
        %p183 = pneg %p99
        %p184 = pneg %p128
        %p185 = pneg %p125
        %s186 = sand.u32 %s115, 1
        %s187 = scalar_lea.sflag [#allocation5], %s186
        %s188 = sand.u32 %s115, 1
        %s189 = smul.addr %s188, 12
        %s190 = scalar_lea.vmem [#allocation4], %s189
        %p191 = scmp.lt.s32.totalorder %s18, 1
        %s192 = scalar_select %p191, %s18, 1
        %s193 = smul.addr %s192, 8
        %s194 = smul.addr %s193, 4
        %s195 = scalar_lea.vmem %s0, %s194
        %v197 = vld [vmem:[%s1] sm:$0xf]
        %v198 = vld [vmem:[%s1 + $0x4] sm:$0xf]
        %v199 = vld [vmem:[%s1 + $0x8] sm:$0xf]
        %v200 = vld [vmem:[%s1 + $0xc] sm:$0xf]
        %v201 = vld [vmem:[%s1 + $0x10] sm:$0xf]
        %v202 = vld [vmem:[%s1 + $0x14] sm:$0xf]
        %v203 = vld [vmem:[%s1 + $0x18] sm:$0xf]
        %v204 = vld [vmem:[%s1 + $0x1c] sm:$0xf]
        %v205 = vld [vmem:[%s1 + $0x20] sm:$0xf]
        %v206 = vld [vmem:[%s1 + $0x24] sm:$0xf]
        %v207 = vld [vmem:[%s1 + $0x28] sm:$0xf]
        %v208 = vld [vmem:[%s1 + $0x2c] sm:$0xf]
        %v209 = vld [vmem:[%s1 + $0x30] sm:$0xf]
        %v210 = vld [vmem:[%s1 + $0x34] sm:$0xf]
        %v211 = vld [vmem:[%s1 + $0x38] sm:$0xf]
        %v212 = vld [vmem:[%s1 + $0x3c] sm:$0xf]
        %v213 = vld [vmem:[%s195] sm:$0xf]
        %v214 = vld [vmem:[%s195 + $0x4] sm:$0xf]
        %v215 = vld [vmem:[%s195 + $0x8] sm:$0xf]
        %v216 = vld [vmem:[%s195 + $0xc] sm:$0xf]
        %v217 = vld [vmem:[%s195 + $0x10] sm:$0xf]
        %v218 = vld [vmem:[%s195 + $0x14] sm:$0xf]
        %v219 = vld [vmem:[%s195 + $0x18] sm:$0xf]
        %v220 = vld [vmem:[%s195 + $0x1c] sm:$0xf]
        %v237 = vunpack.c.l.b16 %v197
        %v238 = vunpack.c.l.b16 %v198
        %v239 = vunpack.c.l.b16 %v199
        %v240 = vunpack.c.l.b16 %v200
        %v241 = vunpack.c.l.b16 %v201
        %v242 = vunpack.c.l.b16 %v202
        %v243 = vunpack.c.l.b16 %v203
        %v244 = vunpack.c.l.b16 %v204
        %v245 = vunpack.c.l.b16 %v205
        %v246 = vunpack.c.l.b16 %v206
        %v247 = vunpack.c.l.b16 %v207
        %v248 = vunpack.c.l.b16 %v208
        %v249 = vunpack.c.l.b16 %v209
        %v250 = vunpack.c.l.b16 %v210
        %v251 = vunpack.c.l.b16 %v211
        %v252 = vunpack.c.l.b16 %v212
        %v253 = vpack.c.b16 %v238, %v237
        %v254 = vpack.c.b16 %v240, %v239
        %v255 = vpack.c.b16 %v242, %v241
        %v256 = vpack.c.b16 %v244, %v243
        %v257 = vpack.c.b16 %v246, %v245
        %v258 = vpack.c.b16 %v248, %v247
        %v259 = vpack.c.b16 %v250, %v249
        %v260 = vpack.c.b16 %v252, %v251
        %v269 = vunpack.c.l.b16 %v213
        %v270 = vunpack.c.l.b16 %v214
        %v271 = vunpack.c.l.b16 %v215
        %v272 = vunpack.c.l.b16 %v216
        %v273 = vunpack.c.l.b16 %v217
        %v274 = vunpack.c.l.b16 %v218
        %v275 = vunpack.c.l.b16 %v219
        %v276 = vunpack.c.l.b16 %v220
        %v277 = vpack.c.b16 %v270, %v269
        %v278 = vpack.c.b16 %v272, %v271
        %v279 = vpack.c.b16 %v274, %v273
        %v280 = vpack.c.b16 %v276, %v275
        %vm285 = vcmask 523264
        %v287 = vsel %vm285, %v253, 0
        %v290 = vsel %vm285, %v254, 0
        %v293 = vsel %vm285, %v255, 0
        %v296 = vsel %vm285, %v256, 0
        %v299 = vsel %vm285, %v257, 0
        %v302 = vsel %vm285, %v258, 0
        %v305 = vsel %vm285, %v259, 0
        %v308 = vsel %vm285, %v260, 0
        %310 = vmatprep.subr.bf16.mxu0 0
        %311 = vmatpush1.bf16.msra.mxu0 0
        %312 = vmatprep.subr.bf16.mxu0 0
        %313 = vmatpush1.bf16.msra.mxu0 0
        %314 = vmatprep.subr.bf16.mxu0 0
        %315 = vmatpush1.bf16.msra.mxu0 0
        %316 = vmatprep.subr.bf16.mxu0 0
        %317 = vmatpush1.bf16.msra.mxu0 0
        %318 = vmatprep.subr.bf16.mxu0 0
        %319 = vmatpush1.bf16.msra.mxu0 %v280
        %320 = vmatprep.subr.bf16.mxu0 0
        %321 = vmatpush1.bf16.msra.mxu0 %v279
        %322 = vmatprep.subr.bf16.mxu0 0
        %323 = vmatpush1.bf16.msra.mxu0 %v278
        %324 = vmatprep.subr.bf16.mxu0 0
        %325 = vmatpush1.bf16.msra.mxu0 %v277
        %326 = vmatprep.subr.bf16.mxu0 0
        %327 = vmatpush2.bf16.msra.mxu0 0
        %328 = vmatprep.subr.bf16.mxu0 0
        %329 = vmatpush2.bf16.msra.mxu0 0
        %330 = vmatprep.subr.bf16.mxu0 0
        %331 = vmatpush2.bf16.msra.mxu0 0
        %332 = vmatprep.subr.bf16.mxu0 0
        %333 = vmatpush2.bf16.msra.mxu0 0
        %334 = vmatprep.subr.bf16.mxu0 0
        %335 = vmatpush2.bf16.msra.mxu0 0
        %336 = vmatprep.subr.bf16.mxu0 0
        %337 = vmatpush2.bf16.msra.mxu0 0
        %338 = vmatprep.subr.bf16.mxu0 0
        %339 = vmatpush2.bf16.msra.mxu0 0
        %340 = vmatprep.subr.bf16.mxu0 0
        %341 = vmatpush2.bf16.msra.mxu0 0
        %342 = vmatprep.mubr.bf16.mxu0 0
        %343 = vmatmul.mubr.bf16.gmra.mxu0 %v287
        %v344 = vpop.f32.mrf.mxu0
        %v345 = vadd.f32 0.0, %v344
        %v346 = vpop.f32.mrf.mxu0
        %v347 = vpop.f32.mrf.mxu0
        %v348 = vadd.f32 0.0, %v347
        %v349 = vpop.f32.mrf.mxu0
        %350 = vmatprep.mubr.bf16.mxu0 0
        %351 = vmatmul.mubr.bf16.gmra.mxu0 %v290
        %v352 = vpop.f32.mrf.mxu0
        %v353 = vadd.f32 0.0, %v352
        %v354 = vpop.f32.mrf.mxu0
        %v355 = vpop.f32.mrf.mxu0
        %v356 = vadd.f32 0.0, %v355
        %v357 = vpop.f32.mrf.mxu0
        %358 = vmatprep.mubr.bf16.mxu0 0
        %359 = vmatmul.mubr.bf16.gmra.mxu0 %v293
        %v360 = vpop.f32.mrf.mxu0
        %v361 = vadd.f32 0.0, %v360
        %v362 = vpop.f32.mrf.mxu0
        %v363 = vpop.f32.mrf.mxu0
        %v364 = vadd.f32 0.0, %v363
        %v365 = vpop.f32.mrf.mxu0
        %366 = vmatprep.mubr.bf16.mxu0 0
        %367 = vmatmul.mubr.bf16.gmra.mxu0 %v296
        %v368 = vpop.f32.mrf.mxu0
        %v369 = vadd.f32 0.0, %v368
        %v370 = vpop.f32.mrf.mxu0
        %v371 = vpop.f32.mrf.mxu0
        %v372 = vadd.f32 0.0, %v371
        %v373 = vpop.f32.mrf.mxu0
        %374 = vmatprep.mubr.bf16.mxu0 0
        %375 = vmatmul.mubr.bf16.gmra.mxu0 %v299
        %v376 = vpop.f32.mrf.mxu0
        %v377 = vadd.f32 0.0, %v376
        %v378 = vpop.f32.mrf.mxu0
        %v379 = vpop.f32.mrf.mxu0
        %v380 = vadd.f32 0.0, %v379
        %v381 = vpop.f32.mrf.mxu0
        %382 = vmatprep.mubr.bf16.mxu0 0
        %383 = vmatmul.mubr.bf16.gmra.mxu0 %v302
        %v384 = vpop.f32.mrf.mxu0
        %v385 = vadd.f32 0.0, %v384
        %v386 = vpop.f32.mrf.mxu0
        %v387 = vpop.f32.mrf.mxu0
        %v388 = vadd.f32 0.0, %v387
        %v389 = vpop.f32.mrf.mxu0
        %390 = vmatprep.mubr.bf16.mxu0 0
        %391 = vmatmul.mubr.bf16.gmra.mxu0 %v305
        %v392 = vpop.f32.mrf.mxu0
        %v393 = vadd.f32 0.0, %v392
        %v394 = vpop.f32.mrf.mxu0
        %v395 = vpop.f32.mrf.mxu0
        %v396 = vadd.f32 0.0, %v395
        %v397 = vpop.f32.mrf.mxu0
        %398 = vmatprep.mubr.bf16.mxu0 0
        %399 = vmatmul.mubr.bf16.gmra.mxu0 %v308
        %v400 = vpop.f32.mrf.mxu0
        %v401 = vadd.f32 0.0, %v400
        %v402 = vpop.f32.mrf.mxu0
        %v403 = vpop.f32.mrf.mxu0
        %v404 = vadd.f32 0.0, %v403
        %v405 = vpop.f32.mrf.mxu0
        %406 = vdwg.mxu0
        %v407 = vpack.c.bf16 %v348, %v345
        %v408 = vpack.c.bf16 %v356, %v353
        %v409 = vpack.c.bf16 %v364, %v361
        %v410 = vpack.c.bf16 %v372, %v369
        %v411 = vpack.c.bf16 %v380, %v377
        %v412 = vpack.c.bf16 %v388, %v385
        %v413 = vpack.c.bf16 %v396, %v393
        %v414 = vpack.c.bf16 %v404, %v401
        %v423 = vunpack.c.l.b16 %v407
        %v424 = vunpack.c.h.b16 %v407
        %v425 = vunpack.c.l.b16 %v408
        %v426 = vunpack.c.h.b16 %v408
        %v427 = vunpack.c.l.b16 %v409
        %v428 = vunpack.c.h.b16 %v409
        %v429 = vunpack.c.l.b16 %v410
        %v430 = vunpack.c.h.b16 %v410
        %v431 = vunpack.c.l.b16 %v411
        %v432 = vunpack.c.h.b16 %v411
        %v433 = vunpack.c.l.b16 %v412
        %v434 = vunpack.c.h.b16 %v412
        %v435 = vunpack.c.l.b16 %v413
        %v436 = vunpack.c.h.b16 %v413
        %v437 = vunpack.c.l.b16 %v414
        %v438 = vunpack.c.h.b16 %v414
        %v439 = vpack.c.b16 %v423, %v423
        %v440 = vpack.c.b16 %v424, %v424
        %v441 = vpack.c.b16 %v425, %v425
        %v442 = vpack.c.b16 %v426, %v426
        %v443 = vpack.c.b16 %v427, %v427
        %v444 = vpack.c.b16 %v428, %v428
        %v445 = vpack.c.b16 %v429, %v429
        %v446 = vpack.c.b16 %v430, %v430
        %v447 = vpack.c.b16 %v431, %v431
        %v448 = vpack.c.b16 %v432, %v432
        %v449 = vpack.c.b16 %v433, %v433
        %v450 = vpack.c.b16 %v434, %v434
        %v451 = vpack.c.b16 %v435, %v435
        %v452 = vpack.c.b16 %v436, %v436
        %v453 = vpack.c.b16 %v437, %v437
        %v454 = vpack.c.b16 %v438, %v438
        %vm471 = vcmask 191488
        %472 = vst.msk [vmem:[#allocation2] sm:$0xf] %vm471, %v439
        %473 = vst.msk [vmem:[#allocation2 + $0x4] sm:$0xf] %vm471, %v440
        %474 = vst.msk [vmem:[#allocation2 + $0x8] sm:$0xf] %vm471, %v441
        %475 = vst.msk [vmem:[#allocation2 + $0xc] sm:$0xf] %vm471, %v442
        %476 = vst.msk [vmem:[#allocation2 + $0x10] sm:$0xf] %vm471, %v443
        %477 = vst.msk [vmem:[#allocation2 + $0x14] sm:$0xf] %vm471, %v444
        %478 = vst.msk [vmem:[#allocation2 + $0x18] sm:$0xf] %vm471, %v445
        %479 = vst.msk [vmem:[#allocation2 + $0x1c] sm:$0xf] %vm471, %v446
        %480 = vst.msk [vmem:[#allocation2 + $0x20] sm:$0xf] %vm471, %v447
        %481 = vst.msk [vmem:[#allocation2 + $0x24] sm:$0xf] %vm471, %v448
        %482 = vst.msk [vmem:[#allocation2 + $0x28] sm:$0xf] %vm471, %v449
        %483 = vst.msk [vmem:[#allocation2 + $0x2c] sm:$0xf] %vm471, %v450
        %484 = vst.msk [vmem:[#allocation2 + $0x30] sm:$0xf] %vm471, %v451
        %485 = vst.msk [vmem:[#allocation2 + $0x34] sm:$0xf] %vm471, %v452
        %486 = vst.msk [vmem:[#allocation2 + $0x38] sm:$0xf] %vm471, %v453
        %487 = vst.msk [vmem:[#allocation2 + $0x3c] sm:$0xf] %vm471, %v454
        %v488 = vld [vmem:[%s2] sm:$0xf]
        %v489 = vld [vmem:[%s3] sm:$0xff]
        %v490 = vld [vmem:[%s3 + $0x8] sm:$0xff]
        %v491 = vld [vmem:[%s3 + $0x10] sm:$0xff]
        %v492 = vld [vmem:[#allocation2] sm:$0xf]
        %493 = vst.msk [vmem:[#allocation3] sm:$0xf] %vm471, %v492
        %v494 = vld [vmem:[#allocation2 + $0x4] sm:$0xf]
        %496 = vrot.lane.b32.xlu0 %v494, 24
        %v497 = vpop.permute.xlu0 %496
        %vm499 = vcmask 388288
        %500 = vst.msk [vmem:[#allocation3] sm:$0xf] %vm499, %v497
        %v501 = vld [vmem:[#allocation2 + $0x8] sm:$0xf]
        %503 = vrot.lane.b32.xlu0 %v501, 48
        %v504 = vpop.permute.xlu0 %503
        %vm506 = vcmask 585088
        %507 = vst.msk [vmem:[#allocation3] sm:$0xf] %vm506, %v504
        %v508 = vld [vmem:[#allocation2 + $0xc] sm:$0xf]
        %510 = vrot.lane.b32.xlu0 %v508, 72
        %v511 = vpop.permute.xlu0 %510
        %vm513 = vcmask 781888
        %514 = vst.msk [vmem:[#allocation3] sm:$0xf] %vm513, %v511
        %v515 = vld [vmem:[#allocation2 + $0x10] sm:$0xf]
        %517 = vrot.lane.b32.xlu0 %v515, 96
        %v518 = vpop.permute.xlu0 %517
        %vm520 = vcmask 978688
        %521 = vst.msk [vmem:[#allocation3] sm:$0xf] %vm520, %v518
        %v522 = vld [vmem:[#allocation2 + $0x14] sm:$0xf]
        %524 = vrot.lane.b32.xlu0 %v522, 120
        %v525 = vpop.permute.xlu0 %524
        %v526 = vrot.slane %v525, 4
        %vm527 = vcmask 982016
        %v528 = vsel %vm527, %v526, %v525
        %vm530 = vcmask 1044416
        %vm531 = vcmask 130052
        %vm532 = vmor %vm531, %vm530
        %533 = vst.msk [vmem:[#allocation3] sm:$0xff] %vm532, %v528
        %v534 = vld [vmem:[#allocation2 + $0x18] sm:$0xf]
        %536 = vrot.lane.b32.xlu0 %v534, 16
        %v537 = vpop.permute.xlu0 %536
        %vm539 = vcmask 322688
        %540 = vst.msk [vmem:[#allocation3 + $0x4] sm:$0xf] %vm539, %v537
        %v541 = vld [vmem:[#allocation2 + $0x1c] sm:$0xf]
        %543 = vrot.lane.b32.xlu0 %v541, 40
        %v544 = vpop.permute.xlu0 %543
        %vm546 = vcmask 519488
        %547 = vst.msk [vmem:[#allocation3 + $0x4] sm:$0xf] %vm546, %v544
        %v548 = vld [vmem:[#allocation2 + $0x20] sm:$0xf]
        %550 = vrot.lane.b32.xlu0 %v548, 64
        %v551 = vpop.permute.xlu0 %550
        %vm553 = vcmask 716288
        %554 = vst.msk [vmem:[#allocation3 + $0x4] sm:$0xf] %vm553, %v551
        %v555 = vld [vmem:[#allocation2 + $0x24] sm:$0xf]
        %557 = vrot.lane.b32.xlu0 %v555, 88
        %v558 = vpop.permute.xlu0 %557
        %vm560 = vcmask 913088
        %561 = vst.msk [vmem:[#allocation3 + $0x4] sm:$0xf] %vm560, %v558
        %v562 = vld [vmem:[#allocation2 + $0x28] sm:$0xf]
        %564 = vrot.lane.b32.xlu0 %v562, 112
        %v565 = vpop.permute.xlu0 %564
        %v566 = vrot.slane %v565, 4
        %vm567 = vcmask 916480
        %v568 = vsel %vm567, %v566, %v565
        %vm570 = vcmask 1044352
        %vm571 = vcmask 64516
        %vm572 = vmor %vm571, %vm570
        %573 = vst.msk [vmem:[#allocation3 + $0x4] sm:$0xff] %vm572, %v568
        %v574 = vld [vmem:[#allocation2 + $0x2c] sm:$0xf]
        %576 = vrot.lane.b32.xlu0 %v574, 8
        %v577 = vpop.permute.xlu0 %576
        %vm579 = vcmask 257088
        %580 = vst.msk [vmem:[#allocation3 + $0x8] sm:$0xf] %vm579, %v577
        %v581 = vld [vmem:[#allocation2 + $0x30] sm:$0xf]
        %583 = vrot.lane.b32.xlu0 %v581, 32
        %v584 = vpop.permute.xlu0 %583
        %vm586 = vcmask 453888
        %587 = vst.msk [vmem:[#allocation3 + $0x8] sm:$0xf] %vm586, %v584
        %v588 = vld [vmem:[#allocation2 + $0x34] sm:$0xf]
        %590 = vrot.lane.b32.xlu0 %v588, 56
        %v591 = vpop.permute.xlu0 %590
        %vm593 = vcmask 650688
        %594 = vst.msk [vmem:[#allocation3 + $0x8] sm:$0xf] %vm593, %v591
        %v595 = vld [vmem:[#allocation2 + $0x38] sm:$0xf]
        %597 = vrot.lane.b32.xlu0 %v595, 80
        %v598 = vpop.permute.xlu0 %597
        %vm600 = vcmask 847488
        %601 = vst.msk [vmem:[#allocation3 + $0x8] sm:$0xf] %vm600, %v598
        %v602 = vld [vmem:[#allocation2 + $0x3c] sm:$0xf]
        %604 = vrot.lane.b32.xlu0 %v602, 104
        %v605 = vpop.permute.xlu0 %604
        %vm607 = vcmask 1044288
        %608 = vst.msk [vmem:[#allocation3 + $0x8] sm:$0xf] %vm607, %v605
        %v609 = vld [vmem:[#allocation3] sm:$0xff]
        %v610 = vld [vmem:[#allocation3 + $0x8] sm:$0xf]
        %613 = vrot.lane.b32.xlu0 %v609, 127
        %v614 = vpop.permute.xlu0 %613
        %615 = vrot.lane.b32.xlu0 %v610, 127
        %v616 = vpop.permute.xlu0 %615
        %v617 = vrot.slane %v614, 4
        %v618 = vrot.slane %v616, 4
        %vm619 = vcmask 1043456
        %v620 = vsel %vm619, %v617, %v618
        %vm621 = vcmask 1039360
        %v622 = vsel %vm621, %v614, %v620
        %625 = vst [vmem:[#allocation3 + $0xc] sm:$0xff] %v622
        %vm626 = vcmask 1035264
        %627 = vst.msk [vmem:[#allocation3 + $0x14] sm:$0xf] %vm626, %v616
        %vm628 = vcmask 1044472
        %629 = vst.msk [vmem:[#allocation3 + $0x14] sm:$0xf] %vm628, 0
        %630 = vrot.lane.b32.xlu0 %v609, 126
        %v631 = vpop.permute.xlu0 %630
        %632 = vrot.lane.b32.xlu0 %v610, 126
        %v633 = vpop.permute.xlu0 %632
        %v634 = vrot.slane %v631, 4
        %v635 = vrot.slane %v633, 4
        %v636 = vsel %vm619, %v634, %v635
        %vm637 = vcmask 1031168
        %v638 = vsel %vm637, %v631, %v636
        %641 = vst [vmem:[#allocation3 + $0x18] sm:$0xff] %v638
        %vm642 = vcmask 1027072
        %643 = vst.msk [vmem:[#allocation3 + $0x20] sm:$0xf] %vm642, %v633
        %vm644 = vcmask 1044464
        %645 = vst.msk [vmem:[#allocation3 + $0x20] sm:$0xf] %vm644, 0
        %646 = vrot.lane.b32.xlu0 %v609, 125
        %v647 = vpop.permute.xlu0 %646
        %648 = vrot.lane.b32.xlu0 %v610, 125
        %v649 = vpop.permute.xlu0 %648
        %v650 = vrot.slane %v647, 4
        %v651 = vrot.slane %v649, 4
        %v652 = vsel %vm619, %v650, %v651
        %vm653 = vcmask 1022976
        %v654 = vsel %vm653, %v647, %v652
        %657 = vst [vmem:[#allocation3 + $0x24] sm:$0xff] %v654
        %vm658 = vcmask 1018880
        %659 = vst.msk [vmem:[#allocation3 + $0x2c] sm:$0xf] %vm658, %v649
        %vm660 = vcmask 1044456
        %661 = vst.msk [vmem:[#allocation3 + $0x2c] sm:$0xf] %vm660, 0
        %662 = vrot.lane.b32.xlu0 %v609, 124
        %v663 = vpop.permute.xlu0 %662
        %664 = vrot.lane.b32.xlu0 %v610, 124
        %v665 = vpop.permute.xlu0 %664
        %v666 = vrot.slane %v663, 4
        %v667 = vrot.slane %v665, 4
        %v668 = vsel %vm619, %v666, %v667
        %vm669 = vcmask 1014784
        %v670 = vsel %vm669, %v663, %v668
        %673 = vst [vmem:[#allocation3 + $0x30] sm:$0xff] %v670
        %vm674 = vcmask 1010688
        %675 = vst.msk [vmem:[#allocation3 + $0x38] sm:$0xf] %vm674, %v665
        %vm676 = vcmask 1044448
        %677 = vst.msk [vmem:[#allocation3 + $0x38] sm:$0xf] %vm676, 0
        %678 = vrot.lane.b32.xlu0 %v609, 123
        %v679 = vpop.permute.xlu0 %678
        %680 = vrot.lane.b32.xlu0 %v610, 123
        %v681 = vpop.permute.xlu0 %680
        %v682 = vrot.slane %v679, 4
        %v683 = vrot.slane %v681, 4
        %v684 = vsel %vm619, %v682, %v683
        %vm685 = vcmask 1006592
        %v686 = vsel %vm685, %v679, %v684
        %689 = vst [vmem:[#allocation3 + $0x3c] sm:$0xff] %v686
        %vm690 = vcmask 1002496
        %691 = vst.msk [vmem:[#allocation3 + $0x44] sm:$0xf] %vm690, %v681
        %vm692 = vcmask 1044440
        %693 = vst.msk [vmem:[#allocation3 + $0x44] sm:$0xf] %vm692, 0
        %694 = vrot.lane.b32.xlu0 %v609, 122
        %v695 = vpop.permute.xlu0 %694
        %696 = vrot.lane.b32.xlu0 %v610, 122
        %v697 = vpop.permute.xlu0 %696
        %v698 = vrot.slane %v695, 4
        %v699 = vrot.slane %v697, 4
        %v700 = vsel %vm619, %v698, %v699
        %vm701 = vcmask 998400
        %v702 = vsel %vm701, %v695, %v700
        %705 = vst [vmem:[#allocation3 + $0x48] sm:$0xff] %v702
        %vm706 = vcmask 994304
        %707 = vst.msk [vmem:[#allocation3 + $0x50] sm:$0xf] %vm706, %v697
        %vm708 = vcmask 1044432
        %709 = vst.msk [vmem:[#allocation3 + $0x50] sm:$0xf] %vm708, 0
        %710 = vrot.lane.b32.xlu0 %v609, 121
        %v711 = vpop.permute.xlu0 %710
        %712 = vrot.lane.b32.xlu0 %v610, 121
        %v713 = vpop.permute.xlu0 %712
        %v714 = vrot.slane %v711, 4
        %v715 = vrot.slane %v713, 4
        %v716 = vsel %vm619, %v714, %v715
        %vm717 = vcmask 990208
        %v718 = vsel %vm717, %v711, %v716
        %721 = vst [vmem:[#allocation3 + $0x54] sm:$0xff] %v718
        %vm722 = vcmask 986112
        %723 = vst.msk [vmem:[#allocation3 + $0x5c] sm:$0xf] %vm722, %v713
        %vm724 = vcmask 1044424
        %725 = vst.msk [vmem:[#allocation3 + $0x5c] sm:$0xf] %vm724, 0
        %726 = vrot.lane.b32.xlu0 %v609, 120
        %v727 = vpop.permute.xlu0 %726
        %728 = vrot.lane.b32.xlu0 %v610, 120
        %v729 = vpop.permute.xlu0 %728
        %v730 = vrot.slane %v727, 4
        %v731 = vrot.slane %v729, 4
        %v732 = vsel %vm619, %v730, %v731
        %v733 = vsel %vm527, %v727, %v732
        %736 = vst [vmem:[#allocation3 + $0x60] sm:$0xff] %v733
        %vm737 = vcmask 977920
        %738 = vst.msk [vmem:[#allocation3 + $0x68] sm:$0xf] %vm737, %v729
        %739 = vst.msk [vmem:[#allocation3 + $0x68] sm:$0xf] %vm530, 0
        %v740 = vld [vmem:[#allocation3] sm:$0xff]
        %v741 = vld [vmem:[#allocation3 + $0x8] sm:$0xf]
        %v742 = vld [vmem:[#allocation3 + $0xc] sm:$0xff]
        %v743 = vld [vmem:[#allocation3 + $0x14] sm:$0xf]
        %v744 = vld [vmem:[#allocation3 + $0x18] sm:$0xff]
        %v745 = vld [vmem:[#allocation3 + $0x20] sm:$0xf]
        %v746 = vld [vmem:[#allocation3 + $0x24] sm:$0xff]
        %v747 = vld [vmem:[#allocation3 + $0x2c] sm:$0xf]
        %v748 = vld [vmem:[#allocation3 + $0x30] sm:$0xff]
        %v749 = vld [vmem:[#allocation3 + $0x38] sm:$0xf]
        %v750 = vld [vmem:[#allocation3 + $0x3c] sm:$0xff]
        %v751 = vld [vmem:[#allocation3 + $0x44] sm:$0xf]
        %v752 = vld [vmem:[#allocation3 + $0x48] sm:$0xff]
        %v753 = vld [vmem:[#allocation3 + $0x50] sm:$0xf]
        %v754 = vld [vmem:[#allocation3 + $0x54] sm:$0xff]
        %v755 = vld [vmem:[#allocation3 + $0x5c] sm:$0xf]
        %v756 = vld [vmem:[#allocation3 + $0x60] sm:$0xff]
        %v757 = vld [vmem:[#allocation3 + $0x68] sm:$0xf]
        %v776 = vunpack.c.l.b16 %v740
        %v777 = vunpack.c.h.b16 %v740
        %v778 = vunpack.c.l.b16 %v741
        %v779 = vunpack.c.l.b16 %v742
        %v780 = vunpack.c.h.b16 %v742
        %v781 = vunpack.c.l.b16 %v743
        %v782 = vunpack.c.l.b16 %v744
        %v783 = vunpack.c.h.b16 %v744
        %v784 = vunpack.c.l.b16 %v745
        %v785 = vunpack.c.l.b16 %v746
        %v786 = vunpack.c.h.b16 %v746
        %v787 = vunpack.c.l.b16 %v747
        %v788 = vunpack.c.l.b16 %v748
        %v789 = vunpack.c.h.b16 %v748
        %v790 = vunpack.c.l.b16 %v749
        %v791 = vunpack.c.l.b16 %v750
        %v792 = vunpack.c.h.b16 %v750
        %v793 = vunpack.c.l.b16 %v751
        %v794 = vunpack.c.l.b16 %v752
        %v795 = vunpack.c.h.b16 %v752
        %v796 = vunpack.c.l.b16 %v753
        %v797 = vunpack.c.l.b16 %v754
        %v798 = vunpack.c.h.b16 %v754
        %v799 = vunpack.c.l.b16 %v755
        %v800 = vunpack.c.l.b16 %v756
        %v801 = vunpack.c.h.b16 %v756
        %v802 = vunpack.c.l.b16 %v757
        %v803 = vpack.c.b16 %v779, %v776
        %v804 = vpack.c.b16 %v780, %v777
        %v805 = vpack.c.b16 %v781, %v778
        %v806 = vpack.c.b16 %v785, %v782
        %v807 = vpack.c.b16 %v786, %v783
        %v808 = vpack.c.b16 %v787, %v784
        %v809 = vpack.c.b16 %v791, %v788
        %v810 = vpack.c.b16 %v792, %v789
        %v811 = vpack.c.b16 %v793, %v790
        %v812 = vpack.c.b16 %v797, %v794
        %v813 = vpack.c.b16 %v798, %v795
        %v814 = vpack.c.b16 %v799, %v796
        %v815 = vpack.c.b16 %v800, %v800
        %v816 = vpack.c.b16 %v801, %v801
        %v817 = vpack.c.b16 %v802, %v802
        %vm830 = vcmask 588800
        %v832 = vsel %vm830, %v488, 0
        %vm834 = vcmask 1043456
        %v836 = vsel %vm834, %v815, 0
        %v839 = vsel %vm834, %v816, 0
        %v842 = vsel %vm834, %v817, 0
        %844 = vmatprep.subr.bf16.mxu0 0
        %845 = vmatpush1.bf16.msra.mxu0 0
        %846 = vmatprep.subr.bf16.mxu0 0
        %847 = vmatpush1.bf16.msra.mxu0 0
        %848 = vmatprep.subr.bf16.mxu0 0
        %849 = vmatpush1.bf16.msra.mxu0 0
        %850 = vmatprep.subr.bf16.mxu0 %v839
        %851 = vmatpush1.bf16.msra.mxu0 %v836
        %852 = vmatprep.subr.bf16.mxu0 %v813
        %853 = vmatpush1.bf16.msra.mxu0 %v812
        %854 = vmatprep.subr.bf16.mxu0 %v810
        %855 = vmatpush1.bf16.msra.mxu0 %v809
        %856 = vmatprep.subr.bf16.mxu0 %v807
        %857 = vmatpush1.bf16.msra.mxu0 %v806
        %858 = vmatprep.subr.bf16.mxu0 %v804
        %859 = vmatpush1.bf16.msra.mxu0 %v803
        %860 = vmatprep.subr.bf16.mxu0 0
        %861 = vmatpush2.bf16.msra.mxu0 0
        %862 = vmatprep.subr.bf16.mxu0 0
        %863 = vmatpush2.bf16.msra.mxu0 0
        %864 = vmatprep.subr.bf16.mxu0 0
        %865 = vmatpush2.bf16.msra.mxu0 0
        %866 = vmatprep.subr.bf16.mxu0 0
        %867 = vmatpush2.bf16.msra.mxu0 0
        %868 = vmatprep.subr.bf16.mxu0 0
        %869 = vmatpush2.bf16.msra.mxu0 0
        %870 = vmatprep.subr.bf16.mxu0 0
        %871 = vmatpush2.bf16.msra.mxu0 0
        %872 = vmatprep.subr.bf16.mxu0 0
        %873 = vmatpush2.bf16.msra.mxu0 0
        %874 = vmatprep.subr.bf16.mxu0 0
        %875 = vmatpush2.bf16.msra.mxu0 0
        %876 = vmatprep.mubr.bf16.mxu0 0
        %877 = vmatmul.mubr.bf16.gmra.mxu0 %v832
        %v878 = vpop.f32.mrf.mxu0
        %v879 = vadd.f32 %v489, %v878
        %v880 = vpop.f32.mrf.mxu0
        %v881 = vadd.f32 %v490, %v880
        %v882 = vpop.f32.mrf.mxu0
        %v883 = vpop.f32.mrf.mxu0
        %884 = vdwg.mxu0
        %885 = vmatprep.subr.bf16.mxu0 0
        %886 = vmatpush1.bf16.msra.mxu0 0
        %887 = vmatprep.subr.bf16.mxu0 0
        %888 = vmatpush1.bf16.msra.mxu0 0
        %889 = vmatprep.subr.bf16.mxu0 0
        %890 = vmatpush1.bf16.msra.mxu0 0
        %891 = vmatprep.subr.bf16.mxu0 0
        %892 = vmatpush1.bf16.msra.mxu0 %v842
        %893 = vmatprep.subr.bf16.mxu0 0
        %894 = vmatpush1.bf16.msra.mxu0 %v814
        %895 = vmatprep.subr.bf16.mxu0 0
        %896 = vmatpush1.bf16.msra.mxu0 %v811
        %897 = vmatprep.subr.bf16.mxu0 0
        %898 = vmatpush1.bf16.msra.mxu0 %v808
        %899 = vmatprep.subr.bf16.mxu0 0
        %900 = vmatpush1.bf16.msra.mxu0 %v805
        %901 = vmatprep.subr.bf16.mxu0 0
        %902 = vmatpush2.bf16.msra.mxu0 0
        %903 = vmatprep.subr.bf16.mxu0 0
        %904 = vmatpush2.bf16.msra.mxu0 0
        %905 = vmatprep.subr.bf16.mxu0 0
        %906 = vmatpush2.bf16.msra.mxu0 0
        %907 = vmatprep.subr.bf16.mxu0 0
        %908 = vmatpush2.bf16.msra.mxu0 0
        %909 = vmatprep.subr.bf16.mxu0 0
        %910 = vmatpush2.bf16.msra.mxu0 0
        %911 = vmatprep.subr.bf16.mxu0 0
        %912 = vmatpush2.bf16.msra.mxu0 0
        %913 = vmatprep.subr.bf16.mxu0 0
        %914 = vmatpush2.bf16.msra.mxu0 0
        %915 = vmatprep.subr.bf16.mxu0 0
        %916 = vmatpush2.bf16.msra.mxu0 0
        %917 = vmatprep.mubr.bf16.mxu0 0
        %918 = vmatmul.mubr.bf16.gmra.mxu0 %v832
        %v919 = vpop.f32.mrf.mxu0
        %v920 = vadd.f32 %v491, %v919
        %v921 = vpop.f32.mrf.mxu0
        %v922 = vpop.f32.mrf.mxu0
        %v923 = vpop.f32.mrf.mxu0
        %924 = vdwg.mxu0
        %v925 = vpack.c.bf16 %v879, %v879
        %v926 = vpack.c.bf16 %v881, %v881
        %v927 = vpack.c.bf16 %v920, %v920
        %v931 = vunpack.c.l.b16 %v925
        %v932 = vunpack.c.l.b16 %v926
        %v933 = vunpack.c.l.b16 %v927
        %v934 = vpack.c.b16 %v932, %v931
        %v935 = vpack.c.b16 %v933, %v933
        %938 = vst [vmem:[%s190] sm:$0xff] %v934
        %939 = vst [vmem:[%s190 + $0x8] sm:$0xf] %v935
        %s940 = sand.u32 %s115, 1
        %s941 = scalar_lea.sflag [#allocation5], %s940
        %s942 = sand.u32 %s115, 1
        %s943 = smul.addr %s942, 12
        %s944 = scalar_lea.vmem [#allocation4], %s943
        // Predicated region
        $region37: #{tpu_custom_call.1} parent=35 // pred_check
          %p945 = pneg %p125
        $region38: #{tpu_custom_call.1} parent=35 // pred_check_branch
          %947 = sbr.rel (%p945) target = $region40
        $region39: #{tpu_custom_call.1} parent=35 // pred_region
          %s949 = ssub.s32 192, 192
          %950 = vsyncadd %s941, %s949
          %s951 = smul.addr %s18, 3
          %s952 = smul.addr %s951, 64
          %s953 = scalar_lea.hbm %s4, %s952
          %s955 = sshll.u32 %s944, 4
          %s956 = int_to_ptr.vmem [resolvable:$true] %s955
          %958 = dma.vmem_to_hbm [thread:$0]  %s956, 192, %s953, %s941
        $region40: #{tpu_custom_call.1} parent=35 // pred_fallthru
          _
      $region36: #{tpu_custom_call.1} parent=5 // pred_fallthru
        _
      %p959 = scmp.le.s32.totalorder 2, %s13
      // Predicated region
      $region41: #{tpu_custom_call.1} parent=5 // pred_check
        %p960 = pneg %p959
      $region42: #{tpu_custom_call.1} parent=5 // pred_check_branch
        %962 = sbr.rel (%p960) target = $region44
      $region43: #{tpu_custom_call.1} parent=5 // pred_region
        %s963 = ssub.s32 %s13, 2
        // Predicated region
        $region45: #{tpu_custom_call.1} parent=43 // pred_check
          %p964 = pneg %p131
        $region46: #{tpu_custom_call.1} parent=43 // pred_check_branch
          %966 = sbr.rel (%p964) target = $region48
        $region47: #{tpu_custom_call.1} parent=43 // pred_region
          %s967 = sand.u32 %s116, 1
          %s968 = scalar_lea.sflag [#allocation5], %s967
          %s969 = sand.u32 %s116, 1
          %s970 = smul.addr %s969, 12
          %s971 = scalar_lea.vmem [#allocation4], %s970
          %972 = dma.done %s968, 192
        $region48: #{tpu_custom_call.1} parent=43 // pred_fallthru
          _
      $region44: #{tpu_custom_call.1} parent=5 // pred_fallthru
        _
    $region6: #{tpu_custom_call.1} parent=1 // loop_footer
      %s17 = sadd.s32 1, %s13
    $region7: #{tpu_custom_call.1} parent=1 // loop_footer_branch
      %12 = sbr.rel target = $region3
    $region8: #{tpu_custom_call.1} parent=1 // loop_exit
      _
    %973 = vsyncpa [#allocation5], 1
    %s974 = scalar_lea.sflag [#allocation5], 1
    %975 = vsyncpa %s974, 1

</llo_original>
